<compile_context>
chip_gen: v6e
topology: v6e:2x2x1
jax: 0.10.0
libtpu: 0.0.40
codegen_flags: <defaults>
</compile_context>

<pallas_src>
import jax
import jax.numpy as jnp
from jax.experimental import pallas as pl
from jax.experimental.pallas import tpu as pltpu

DIMS = [784, 512, 256, 128, 64, 10]
N_PAD = 128     # lane-dense output width; real logits are columns [:10]


def _round_up(n, m):
    return ((n + m - 1) // m) * m


def _chip_config():
    """(TB_MAX, vmem_limit_bytes) per TPU generation."""
    try:
        kind = jax.devices()[0].device_kind.lower()
    except Exception:  # pragma: no cover - defensive
        kind = ""
    if "v5" in kind or "v6" in kind:
        # 128 MiB physical VMEM: big tiles, raised scoped-VMEM limit.
        return 4096, 64 * 1024 * 1024
    # v7x (64 MiB VMEM) and conservative default for anything else.
    return 2048, 32 * 1024 * 1024


def _choose_tile(b, tb_max):
    """Pick (tb, b_pad): even number of >=2 grid steps, tb multiple of 8."""
    n_steps = max(2, pl.cdiv(b, tb_max))
    if n_steps % 2:
        n_steps += 1
    tb = _round_up(pl.cdiv(b, n_steps), 8)
    b_pad = tb * n_steps
    return tb, b_pad


def _mlp_kernel(x_ref,
                w1_ref, b1_ref,
                w2_ref, b2_ref,
                w3_ref, b3_ref,
                w4_ref, b4_ref,
                w5_ref, b5_ref,
                out_ref):
    """Fused 5-layer MLP forward on one [tb, 784] fp32 batch tile.

    Input is cast to bf16 in-kernel; weights are bf16 [in, out]; matmuls
    accumulate in fp32 on the MXU, bias add + ReLU run in fp32, activations
    are fed back to the MXU as bf16.  Logits are stored as bf16 (padded to
    128 lanes, valid columns [:10])."""

    def linear(h_bf16, w_ref, b_ref):
        acc = jnp.dot(h_bf16, w_ref[...], preferred_element_type=jnp.float32)
        return acc + b_ref[...]

    h = x_ref[...].astype(jnp.bfloat16)                                   # [tb, 784] bf16
    h = jnp.maximum(linear(h, w1_ref, b1_ref), 0.0).astype(jnp.bfloat16)  # 784 -> 512
    h = jnp.maximum(linear(h, w2_ref, b2_ref), 0.0).astype(jnp.bfloat16)  # 512 -> 256
    h = jnp.maximum(linear(h, w3_ref, b3_ref), 0.0).astype(jnp.bfloat16)  # 256 -> 128
    h = jnp.maximum(linear(h, w4_ref, b4_ref), 0.0).astype(jnp.bfloat16)  # 128 ->  64
    h = linear(h, w5_ref, b5_ref)                                         #  64 -> 128 (10 valid)
    out_ref[...] = h.astype(out_ref.dtype)


@jax.jit
def mlp_forward(x, params):
    """x: [B, 1, 28, 28] (or any shape whose trailing dims flatten to 784)."""
    x2d = x.reshape(-1, DIMS[0]).astype(jnp.float32)
    b = x2d.shape[0]

    tb_max, vmem_limit = _chip_config()
    tb, b_pad = _choose_tile(b, tb_max)

    # Only the batch dim is padded (and only when needed); no feature pad/cast pass.
    if b_pad != b:
        x2d = jnp.pad(x2d, ((0, b_pad - b), (0, 0)))

    # Parameters: bf16 weights [in, out], fp32 biases [1, out].
    # Last layer N padded 10 -> 128 with zero columns (mathematically inert).
    flat = []
    n_layers = len(params)
    for idx, (w, bias) in enumerate(params):
        w = w.astype(jnp.float32)
        bias = bias.astype(jnp.float32).reshape(1, -1)
        if idx == n_layers - 1:
            w = jnp.pad(w, ((0, 0), (0, N_PAD - w.shape[1])))
            bias = jnp.pad(bias, ((0, 0), (0, N_PAD - bias.shape[1])))
        flat.append(w.astype(jnp.bfloat16))
        flat.append(bias)

    grid = (b_pad // tb,)

    resident = lambda i: (0, 0)   # weights/biases stay VMEM-resident, single-buffered
    in_specs = [pl.BlockSpec((tb, DIMS[0]), lambda i: (i, 0))]
    for a in flat:
        in_specs.append(
            pl.BlockSpec(a.shape, resident, pipeline_mode=pl.Buffered(1)))
    out_specs = pl.BlockSpec((tb, N_PAD), lambda i: (i, 0))

    flops = 2 * b_pad * (DIMS[0] * 512 + 512 * 256 + 256 * 128 + 128 * 64 + 64 * N_PAD)
    bytes_accessed = (b_pad * DIMS[0] * 4                                 # fp32 activations in
                      + sum(int(a.size) * a.dtype.itemsize for a in flat)  # params
                      + b_pad * N_PAD * 2)                                # bf16 logits out

    out = pl.pallas_call(
        _mlp_kernel,
        out_shape=jax.ShapeDtypeStruct((b_pad, N_PAD), jnp.bfloat16),
        grid=grid,
        in_specs=in_specs,
        out_specs=out_specs,
        compiler_params=pltpu.CompilerParams(
            dimension_semantics=("parallel",),
            vmem_limit_bytes=vmem_limit,
        ),
        cost_estimate=pl.CostEstimate(
            flops=flops, transcendentals=0, bytes_accessed=bytes_accessed),
    )(x2d, *flat)

    return out[:b, :DIMS[-1]].astype(jnp.float32)


def init_params(key):
    """Deterministic init mimicking PyTorch nn.Linear default (U(-k, k), k=1/sqrt(fan_in)).

    Weights are stored as [in_features, out_features] (transposed vs. torch)."""
    params = []
    for i in range(len(DIMS) - 1):
        fan_in, fan_out = DIMS[i], DIMS[i + 1]
        key, kw, kb = jax.random.split(key, 3)
        bound = 1.0 / (fan_in ** 0.5)
        w = jax.random.uniform(kw, (fan_in, fan_out), jnp.float32, -bound, bound)
        bias = jax.random.uniform(kb, (1, fan_out), jnp.float32, -bound, bound)
        params.append((w, bias))
    return params


def reference_forward(x, params):
    """Same math as the kernel (bf16 MXU inputs, fp32 accumulation, bf16 logits)."""
    h = x.reshape(-1, DIMS[0]).astype(jnp.float32)
    for i, (w, bias) in enumerate(params):
        h = jnp.dot(h.astype(jnp.bfloat16), w.astype(jnp.bfloat16),
                    preferred_element_type=jnp.float32) + bias.reshape(1, -1)
        if i < len(params) - 1:
            h = jnp.maximum(h, 0.0)
    return h.astype(jnp.bfloat16).astype(jnp.float32)


if __name__ == "__main__":
    key = jax.random.PRNGKey(0)
    kx, kp = jax.random.split(key)
    params = init_params(kp)

    # Small MNIST-like batch, NCHW.
    x = jax.random.normal(kx, (8, 1, 28, 28), jnp.float32)
    out = jax.block_until_ready(mlp_forward(x, params))
    ref = reference_forward(x, params)
    assert out.shape == (8, 10), out.shape
    assert jnp.allclose(out, ref, atol=2e-2, rtol=2e-2), "mismatch vs. JAX reference"

    # Odd batch size to exercise batch padding / multi-step grid.
    x2 = jax.random.normal(kx, (20, 1, 28, 28), jnp.float32)
    out2 = jax.block_until_ready(mlp_forward(x2, params))
    ref2 = reference_forward(x2, params)
    assert out2.shape == (20, 10), out2.shape
    assert jnp.allclose(out2, ref2, atol=2e-2, rtol=2e-2), "mismatch vs. JAX reference (b=20)"

    print("KERNEL_OK")
</pallas_src>

<mosaic_0001>
module attributes {stable_mosaic.version = 11 : i64} {
  func.func @_mlp_kernel(%arg0: i32, %arg1: memref<8x784xf32, #tpu.memory_space<vmem>>, %arg2: memref<784x512xbf16, #tpu.memory_space<vmem>>, %arg3: memref<1x512xf32, #tpu.memory_space<vmem>>, %arg4: memref<512x256xbf16, #tpu.memory_space<vmem>>, %arg5: memref<1x256xf32, #tpu.memory_space<vmem>>, %arg6: memref<256x128xbf16, #tpu.memory_space<vmem>>, %arg7: memref<1x128xf32, #tpu.memory_space<vmem>>, %arg8: memref<128x64xbf16, #tpu.memory_space<vmem>>, %arg9: memref<1x64xf32, #tpu.memory_space<vmem>>, %arg10: memref<64x128xbf16, #tpu.memory_space<vmem>>, %arg11: memref<1x128xf32, #tpu.memory_space<vmem>>, %arg12: memref<8x128xbf16, #tpu.memory_space<vmem>>) attributes {dimension_semantics = [#tpu.dimension_semantics<parallel>], iteration_bounds = array<i64: 2>, scalar_prefetch = 0 : i64, scratch_operands = 0 : i64, tpu.core_type = #tpu.core_type<tc>, window_params = [{transform_indices = @transform_0, window_bounds = array<i64: 8, 784>}, {pipeline_mode = #tpu.pipeline_mode<synchronous>, transform_indices = @transform_1, window_bounds = array<i64: 784, 512>}, {pipeline_mode = #tpu.pipeline_mode<synchronous>, transform_indices = @transform_2, window_bounds = array<i64: 1, 512>}, {pipeline_mode = #tpu.pipeline_mode<synchronous>, transform_indices = @transform_3, window_bounds = array<i64: 512, 256>}, {pipeline_mode = #tpu.pipeline_mode<synchronous>, transform_indices = @transform_4, window_bounds = array<i64: 1, 256>}, {pipeline_mode = #tpu.pipeline_mode<synchronous>, transform_indices = @transform_5, window_bounds = array<i64: 256, 128>}, {pipeline_mode = #tpu.pipeline_mode<synchronous>, transform_indices = @transform_6, window_bounds = array<i64: 1, 128>}, {pipeline_mode = #tpu.pipeline_mode<synchronous>, transform_indices = @transform_7, window_bounds = array<i64: 128, 64>}, {pipeline_mode = #tpu.pipeline_mode<synchronous>, transform_indices = @transform_8, window_bounds = array<i64: 1, 64>}, {pipeline_mode = #tpu.pipeline_mode<synchronous>, transform_indices = @transform_9, window_bounds = array<i64: 64, 128>}, {pipeline_mode = #tpu.pipeline_mode<synchronous>, transform_indices = @transform_10, window_bounds = array<i64: 1, 128>}, {transform_indices = @transform_11, window_bounds = array<i64: 8, 128>}]} {
    %c0 = arith.constant 0 : index
    %c0_0 = arith.constant 0 : index
    %0 = vector.load %arg1[%c0, %c0_0] : memref<8x784xf32, #tpu.memory_space<vmem>>, vector<8x784xf32>
    %1 = arith.truncf %0 : vector<8x784xf32> to vector<8x784xbf16>
    %c0_1 = arith.constant 0 : index
    %c0_2 = arith.constant 0 : index
    %2 = vector.load %arg2[%c0_1, %c0_2] : memref<784x512xbf16, #tpu.memory_space<vmem>>, vector<784x512xbf16>
    %cst = arith.constant dense<0.000000e+00> : vector<8x512xf32>
    %3 = tpu.matmul %1, %2, %cst {dimension_numbers = #tpu.dot_dimension_numbers<[1], [0], [0], [1], [0, 0, 1, 1], [], []>} : vector<8x784xbf16>, vector<784x512xbf16>, vector<8x512xf32> -> vector<8x512xf32>
    %c0_3 = arith.constant 0 : index
    %c0_4 = arith.constant 0 : index
    %4 = vector.load %arg3[%c0_3, %c0_4] : memref<1x512xf32, #tpu.memory_space<vmem>>, vector<1x512xf32>
    %5 = vector.broadcast %4 : vector<1x512xf32> to vector<8x512xf32>
    %6 = arith.addf %3, %5 : vector<8x512xf32>
    %cst_5 = arith.constant 0.000000e+00 : f32
    %7 = vector.broadcast %cst_5 : f32 to vector<8x512xf32>
    %8 = arith.maximumf %6, %7 : vector<8x512xf32>
    %9 = arith.truncf %8 : vector<8x512xf32> to vector<8x512xbf16>
    %c0_6 = arith.constant 0 : index
    %c0_7 = arith.constant 0 : index
    %10 = vector.load %arg4[%c0_6, %c0_7] : memref<512x256xbf16, #tpu.memory_space<vmem>>, vector<512x256xbf16>
    %cst_8 = arith.constant dense<0.000000e+00> : vector<8x256xf32>
    %11 = tpu.matmul %9, %10, %cst_8 {dimension_numbers = #tpu.dot_dimension_numbers<[1], [0], [0], [1], [0, 0, 1, 1], [], []>} : vector<8x512xbf16>, vector<512x256xbf16>, vector<8x256xf32> -> vector<8x256xf32>
    %c0_9 = arith.constant 0 : index
    %c0_10 = arith.constant 0 : index
    %12 = vector.load %arg5[%c0_9, %c0_10] : memref<1x256xf32, #tpu.memory_space<vmem>>, vector<1x256xf32>
    %13 = vector.broadcast %12 : vector<1x256xf32> to vector<8x256xf32>
    %14 = arith.addf %11, %13 : vector<8x256xf32>
    %cst_11 = arith.constant 0.000000e+00 : f32
    %15 = vector.broadcast %cst_11 : f32 to vector<8x256xf32>
    %16 = arith.maximumf %14, %15 : vector<8x256xf32>
    %17 = arith.truncf %16 : vector<8x256xf32> to vector<8x256xbf16>
    %c0_12 = arith.constant 0 : index
    %c0_13 = arith.constant 0 : index
    %18 = vector.load %arg6[%c0_12, %c0_13] : memref<256x128xbf16, #tpu.memory_space<vmem>>, vector<256x128xbf16>
    %cst_14 = arith.constant dense<0.000000e+00> : vector<8x128xf32>
    %19 = tpu.matmul %17, %18, %cst_14 {dimension_numbers = #tpu.dot_dimension_numbers<[1], [0], [0], [1], [0, 0, 1, 1], [], []>} : vector<8x256xbf16>, vector<256x128xbf16>, vector<8x128xf32> -> vector<8x128xf32>
    %c0_15 = arith.constant 0 : index
    %c0_16 = arith.constant 0 : index
    %20 = vector.load %arg7[%c0_15, %c0_16] : memref<1x128xf32, #tpu.memory_space<vmem>>, vector<1x128xf32>
    %21 = vector.broadcast %20 : vector<1x128xf32> to vector<8x128xf32>
    %22 = arith.addf %19, %21 : vector<8x128xf32>
    %cst_17 = arith.constant 0.000000e+00 : f32
    %23 = vector.broadcast %cst_17 : f32 to vector<8x128xf32>
    %24 = arith.maximumf %22, %23 : vector<8x128xf32>
    %25 = arith.truncf %24 : vector<8x128xf32> to vector<8x128xbf16>
    %c0_18 = arith.constant 0 : index
    %c0_19 = arith.constant 0 : index
    %26 = vector.load %arg8[%c0_18, %c0_19] : memref<128x64xbf16, #tpu.memory_space<vmem>>, vector<128x64xbf16>
    %cst_20 = arith.constant dense<0.000000e+00> : vector<8x64xf32>
    %27 = tpu.matmul %25, %26, %cst_20 {dimension_numbers = #tpu.dot_dimension_numbers<[1], [0], [0], [1], [0, 0, 1, 1], [], []>} : vector<8x128xbf16>, vector<128x64xbf16>, vector<8x64xf32> -> vector<8x64xf32>
    %c0_21 = arith.constant 0 : index
    %c0_22 = arith.constant 0 : index
    %28 = vector.load %arg9[%c0_21, %c0_22] : memref<1x64xf32, #tpu.memory_space<vmem>>, vector<1x64xf32>
    %29 = vector.broadcast %28 : vector<1x64xf32> to vector<8x64xf32>
    %30 = arith.addf %27, %29 : vector<8x64xf32>
    %cst_23 = arith.constant 0.000000e+00 : f32
    %31 = vector.broadcast %cst_23 : f32 to vector<8x64xf32>
    %32 = arith.maximumf %30, %31 : vector<8x64xf32>
    %33 = arith.truncf %32 : vector<8x64xf32> to vector<8x64xbf16>
    %c0_24 = arith.constant 0 : index
    %c0_25 = arith.constant 0 : index
    %34 = vector.load %arg10[%c0_24, %c0_25] : memref<64x128xbf16, #tpu.memory_space<vmem>>, vector<64x128xbf16>
    %cst_26 = arith.constant dense<0.000000e+00> : vector<8x128xf32>
    %35 = tpu.matmul %33, %34, %cst_26 {dimension_numbers = #tpu.dot_dimension_numbers<[1], [0], [0], [1], [0, 0, 1, 1], [], []>} : vector<8x64xbf16>, vector<64x128xbf16>, vector<8x128xf32> -> vector<8x128xf32>
    %c0_27 = arith.constant 0 : index
    %c0_28 = arith.constant 0 : index
    %36 = vector.load %arg11[%c0_27, %c0_28] : memref<1x128xf32, #tpu.memory_space<vmem>>, vector<1x128xf32>
    %37 = vector.broadcast %36 : vector<1x128xf32> to vector<8x128xf32>
    %38 = arith.addf %35, %37 : vector<8x128xf32>
    %39 = arith.truncf %38 : vector<8x128xf32> to vector<8x128xbf16>
    %c0_29 = arith.constant 0 : index
    %c0_30 = arith.constant 0 : index
    %40 = vector.load %arg12[%c0_29, %c0_30] : memref<8x128xbf16, #tpu.memory_space<vmem>>, vector<8x128xbf16>
    tpu.vector_store %arg12[%c0_29, %c0_30], %39 {strides = array<i32>} : memref<8x128xbf16, #tpu.memory_space<vmem>>, vector<8x128xbf16>,
    return
  }
  func.func @transform_0(%arg0: i32) -> (i32, i32) {
    %c0_i32 = arith.constant 0 : i32
    %c0_i32_0 = arith.constant 0 : i32
    return %arg0, %c0_i32 : i32, i32
  }
  func.func @transform_1(%arg0: i32) -> (i32, i32) {
    %c0_i32 = arith.constant 0 : i32
    %c0_i32_0 = arith.constant 0 : i32
    %c0_i32_1 = arith.constant 0 : i32
    return %c0_i32, %c0_i32_0 : i32, i32
  }
  func.func @transform_2(%arg0: i32) -> (i32, i32) {
    %c0_i32 = arith.constant 0 : i32
    %c0_i32_0 = arith.constant 0 : i32
    %c0_i32_1 = arith.constant 0 : i32
    return %c0_i32, %c0_i32_0 : i32, i32
  }
  func.func @transform_3(%arg0: i32) -> (i32, i32) {
    %c0_i32 = arith.constant 0 : i32
    %c0_i32_0 = arith.constant 0 : i32
    %c0_i32_1 = arith.constant 0 : i32
    return %c0_i32, %c0_i32_0 : i32, i32
  }
  func.func @transform_4(%arg0: i32) -> (i32, i32) {
    %c0_i32 = arith.constant 0 : i32
    %c0_i32_0 = arith.constant 0 : i32
    %c0_i32_1 = arith.constant 0 : i32
    return %c0_i32, %c0_i32_0 : i32, i32
  }
  func.func @transform_5(%arg0: i32) -> (i32, i32) {
    %c0_i32 = arith.constant 0 : i32
    %c0_i32_0 = arith.constant 0 : i32
    %c0_i32_1 = arith.constant 0 : i32
    return %c0_i32, %c0_i32_0 : i32, i32
  }
  func.func @transform_6(%arg0: i32) -> (i32, i32) {
    %c0_i32 = arith.constant 0 : i32
    %c0_i32_0 = arith.constant 0 : i32
    %c0_i32_1 = arith.constant 0 : i32
    return %c0_i32, %c0_i32_0 : i32, i32
  }
  func.func @transform_7(%arg0: i32) -> (i32, i32) {
    %c0_i32 = arith.constant 0 : i32
    %c0_i32_0 = arith.constant 0 : i32
    %c0_i32_1 = arith.constant 0 : i32
    return %c0_i32, %c0_i32_0 : i32, i32
  }
  func.func @transform_8(%arg0: i32) -> (i32, i32) {
    %c0_i32 = arith.constant 0 : i32
    %c0_i32_0 = arith.constant 0 : i32
    %c0_i32_1 = arith.constant 0 : i32
    return %c0_i32, %c0_i32_0 : i32, i32
  }
  func.func @transform_9(%arg0: i32) -> (i32, i32) {
    %c0_i32 = arith.constant 0 : i32
    %c0_i32_0 = arith.constant 0 : i32
    %c0_i32_1 = arith.constant 0 : i32
    return %c0_i32, %c0_i32_0 : i32, i32
  }
  func.func @transform_10(%arg0: i32) -> (i32, i32) {
    %c0_i32 = arith.constant 0 : i32
    %c0_i32_0 = arith.constant 0 : i32
    %c0_i32_1 = arith.constant 0 : i32
    return %c0_i32, %c0_i32_0 : i32, i32
  }
  func.func @transform_11(%arg0: i32) -> (i32, i32) {
    %c0_i32 = arith.constant 0 : i32
    %c0_i32_0 = arith.constant 0 : i32
    return %arg0, %c0_i32 : i32, i32
  }
}

</mosaic_0001>

<llo_original>
// kernel: mlp_forward.1
$region0: #{mlp_forward.1}
  #allocation0 [shape = 'u32[]', space=smem, size = 0x4, offset = 0x4, fixed_abs, tag = 'smem constant byte address 0x4 - core index']
  #allocation1 [shape = 'u32[144,128]{1,0:T(1,128)}', space=vmem, size = 0x12000, scoped, tag = 'internal scratch']
  %s0 = inlined_call_operand.vmem [shape: f32[16,784], index: 0, kind: input, shape index: {}]
  %s1 = inlined_call_operand.vmem [shape: bf16[784,512], index: 1, kind: input, shape index: {}]
  %s2 = inlined_call_operand.vmem [shape: f32[1,512], index: 2, kind: input, shape index: {}]
  %s3 = inlined_call_operand.vmem [shape: bf16[512,256], index: 3, kind: input, shape index: {}]
  %s4 = inlined_call_operand.vmem [shape: f32[1,256], index: 4, kind: input, shape index: {}]
  %s5 = inlined_call_operand.vmem [shape: bf16[256,128], index: 5, kind: input, shape index: {}]
  %s6 = inlined_call_operand.vmem [shape: f32[1,128], index: 6, kind: input, shape index: {}]
  %s7 = inlined_call_operand.vmem [shape: bf16[128,64], index: 7, kind: input, shape index: {}]
  %s8 = inlined_call_operand.vmem [shape: f32[1,64], index: 8, kind: input, shape index: {}]
  %s9 = inlined_call_operand.vmem [shape: bf16[64,128], index: 9, kind: input, shape index: {}]
  %s10 = inlined_call_operand.vmem [shape: f32[1,128], index: 10, kind: input, shape index: {}]
  %s11 = inlined_call_operand.vmem [shape: bf16[16,128], index: 11, kind: output, shape index: {}]
  %s12 = sld [smem:[#allocation0]]
  $region77: #{mlp_forward.1} parent=0
    _
  %s14 = ssub.s32 1, %s12
  %s15 = scalar_select 0, %s14, %s12
  loop: start=0, step=1, limit=4
  $region2: #{mlp_forward.1} parent=0 // loop_pre_header
    _
  $region3: #{mlp_forward.1} parent=0 // loop_header
    %s17 = sphi 0, %s21
    %p18 = scmp.ge.s32.totalorder %s17, 4
    %s27 = sphi 0, %s29
    %s30 = sphi 0, %s27
    %s31 = sphi 0, %s30
    %s47 = sphi 0, %s31
    %s51 = sphi 0, %s51
    %s53 = sphi 0, %s51
    %s54 = sphi 0, %s53
    %s68 = sphi 0, %s54
    %s72 = sphi 0, %s72
    %s74 = sphi 0, %s72
    %s75 = sphi 0, %s74
    %s89 = sphi 0, %s75
    %s93 = sphi 0, %s93
    %s95 = sphi 0, %s93
    %s96 = sphi 0, %s95
    %s110 = sphi 0, %s96
    %s114 = sphi 0, %s114
    %s116 = sphi 0, %s114
    %s117 = sphi 0, %s116
    %s131 = sphi 0, %s117
    %s135 = sphi 0, %s135
    %s137 = sphi 0, %s135
    %s138 = sphi 0, %s137
    %s152 = sphi 0, %s138
    %s156 = sphi 0, %s156
    %s158 = sphi 0, %s156
    %s159 = sphi 0, %s158
    %s173 = sphi 0, %s159
    %s177 = sphi 0, %s177
    %s179 = sphi 0, %s177
    %s180 = sphi 0, %s179
    %s194 = sphi 0, %s180
    %s198 = sphi 0, %s198
    %s200 = sphi 0, %s198
    %s201 = sphi 0, %s200
    %s215 = sphi 0, %s201
    %s219 = sphi 0, %s219
    %s221 = sphi 0, %s219
    %s222 = sphi 0, %s221
    %s236 = sphi 0, %s222
    %s240 = sphi 0, %s240
    %s242 = sphi 0, %s240
    %s243 = sphi 0, %s242
    %s257 = sphi 0, %s243
    %s263 = sphi 0, %s265
    %s266 = sphi 0, %s263
    %s267 = sphi 0, %s266
    %s283 = sphi 0, %s267
  $region4: #{mlp_forward.1} parent=0 // loop_header_branch
    %20 = sbr.rel (%p18) target = $region8
  $region5: #{mlp_forward.1} parent=0 // loop_body
    %s22 = ssub.s32 %s17, 1
    %s23 = ssub.s32 %s17, 2
    %s24 = sadd.s32 %s17, 1
    %s25 = ssub.s32 %s17, %s24
    %p26 = scmp.eq.s32.totalorder %s25, 0
    %s28 = sadd.s32 %s27, 1
    %s29 = scalar_select %p26, %s27, %s28
    %p32 = pneg %p26
    %p33 = scmp.eq.s32.totalorder %s17, 1
    %p34 = por %p32, %p33
    %p35 = scmp.ne.s32.totalorder %s27, %s30
    %p36 = scmp.eq.s32.totalorder %s17, 0
    %p37 = por %p35, %p36
    %p38 = scmp.ne.s32.totalorder %s27, %s30
    %p39 = scmp.eq.s32.totalorder %s22, 1
    %p40 = por %p38, %p39
    %p41 = scmp.ne.s32.totalorder %s30, %s31
    %p42 = scmp.eq.s32.totalorder %s22, 0
    %p43 = por %p41, %p42
    %p44 = scmp.ne.s32.totalorder %s30, %s31
    %p45 = scmp.eq.s32.totalorder %s23, 1
    %p46 = por %p44, %p45
    %p48 = scmp.ne.s32.totalorder %s31, %s47
    %p49 = scmp.eq.s32.totalorder %s23, 0
    %p50 = por %p48, %p49
    %s52 = sadd.s32 %s51, 1
    %p55 = scmp.eq.s32.totalorder %s17, 1
    %p56 = scmp.ne.s32.totalorder %s51, %s53
    %p57 = scmp.eq.s32.totalorder %s17, 0
    %p58 = por %p56, %p57
    %p59 = scmp.ne.s32.totalorder %s51, %s53
    %p60 = scmp.eq.s32.totalorder %s22, 1
    %p61 = por %p59, %p60
    %p62 = scmp.ne.s32.totalorder %s53, %s54
    %p63 = scmp.eq.s32.totalorder %s22, 0
    %p64 = por %p62, %p63
    %p65 = scmp.ne.s32.totalorder %s53, %s54
    %p66 = scmp.eq.s32.totalorder %s23, 1
    %p67 = por %p65, %p66
    %p69 = scmp.ne.s32.totalorder %s54, %s68
    %p70 = scmp.eq.s32.totalorder %s23, 0
    %p71 = por %p69, %p70
    %s73 = sadd.s32 %s72, 1
    %p76 = scmp.eq.s32.totalorder %s17, 1
    %p77 = scmp.ne.s32.totalorder %s72, %s74
    %p78 = scmp.eq.s32.totalorder %s17, 0
    %p79 = por %p77, %p78
    %p80 = scmp.ne.s32.totalorder %s72, %s74
    %p81 = scmp.eq.s32.totalorder %s22, 1
    %p82 = por %p80, %p81
    %p83 = scmp.ne.s32.totalorder %s74, %s75
    %p84 = scmp.eq.s32.totalorder %s22, 0
    %p85 = por %p83, %p84
    %p86 = scmp.ne.s32.totalorder %s74, %s75
    %p87 = scmp.eq.s32.totalorder %s23, 1
    %p88 = por %p86, %p87
    %p90 = scmp.ne.s32.totalorder %s75, %s89
    %p91 = scmp.eq.s32.totalorder %s23, 0
    %p92 = por %p90, %p91
    %s94 = sadd.s32 %s93, 1
    %p97 = scmp.eq.s32.totalorder %s17, 1
    %p98 = scmp.ne.s32.totalorder %s93, %s95
    %p99 = scmp.eq.s32.totalorder %s17, 0
    %p100 = por %p98, %p99
    %p101 = scmp.ne.s32.totalorder %s93, %s95
    %p102 = scmp.eq.s32.totalorder %s22, 1
    %p103 = por %p101, %p102
    %p104 = scmp.ne.s32.totalorder %s95, %s96
    %p105 = scmp.eq.s32.totalorder %s22, 0
    %p106 = por %p104, %p105
    %p107 = scmp.ne.s32.totalorder %s95, %s96
    %p108 = scmp.eq.s32.totalorder %s23, 1
    %p109 = por %p107, %p108
    %p111 = scmp.ne.s32.totalorder %s96, %s110
    %p112 = scmp.eq.s32.totalorder %s23, 0
    %p113 = por %p111, %p112
    %s115 = sadd.s32 %s114, 1
    %p118 = scmp.eq.s32.totalorder %s17, 1
    %p119 = scmp.ne.s32.totalorder %s114, %s116
    %p120 = scmp.eq.s32.totalorder %s17, 0
    %p121 = por %p119, %p120
    %p122 = scmp.ne.s32.totalorder %s114, %s116
    %p123 = scmp.eq.s32.totalorder %s22, 1
    %p124 = por %p122, %p123
    %p125 = scmp.ne.s32.totalorder %s116, %s117
    %p126 = scmp.eq.s32.totalorder %s22, 0
    %p127 = por %p125, %p126
    %p128 = scmp.ne.s32.totalorder %s116, %s117
    %p129 = scmp.eq.s32.totalorder %s23, 1
    %p130 = por %p128, %p129
    %p132 = scmp.ne.s32.totalorder %s117, %s131
    %p133 = scmp.eq.s32.totalorder %s23, 0
    %p134 = por %p132, %p133
    %s136 = sadd.s32 %s135, 1
    %p139 = scmp.eq.s32.totalorder %s17, 1
    %p140 = scmp.ne.s32.totalorder %s135, %s137
    %p141 = scmp.eq.s32.totalorder %s17, 0
    %p142 = por %p140, %p141
    %p143 = scmp.ne.s32.totalorder %s135, %s137
    %p144 = scmp.eq.s32.totalorder %s22, 1
    %p145 = por %p143, %p144
    %p146 = scmp.ne.s32.totalorder %s137, %s138
    %p147 = scmp.eq.s32.totalorder %s22, 0
    %p148 = por %p146, %p147
    %p149 = scmp.ne.s32.totalorder %s137, %s138
    %p150 = scmp.eq.s32.totalorder %s23, 1
    %p151 = por %p149, %p150
    %p153 = scmp.ne.s32.totalorder %s138, %s152
    %p154 = scmp.eq.s32.totalorder %s23, 0
    %p155 = por %p153, %p154
    %s157 = sadd.s32 %s156, 1
    %p160 = scmp.eq.s32.totalorder %s17, 1
    %p161 = scmp.ne.s32.totalorder %s156, %s158
    %p162 = scmp.eq.s32.totalorder %s17, 0
    %p163 = por %p161, %p162
    %p164 = scmp.ne.s32.totalorder %s156, %s158
    %p165 = scmp.eq.s32.totalorder %s22, 1
    %p166 = por %p164, %p165
    %p167 = scmp.ne.s32.totalorder %s158, %s159
    %p168 = scmp.eq.s32.totalorder %s22, 0
    %p169 = por %p167, %p168
    %p170 = scmp.ne.s32.totalorder %s158, %s159
    %p171 = scmp.eq.s32.totalorder %s23, 1
    %p172 = por %p170, %p171
    %p174 = scmp.ne.s32.totalorder %s159, %s173
    %p175 = scmp.eq.s32.totalorder %s23, 0
    %p176 = por %p174, %p175
    %s178 = sadd.s32 %s177, 1
    %p181 = scmp.eq.s32.totalorder %s17, 1
    %p182 = scmp.ne.s32.totalorder %s177, %s179
    %p183 = scmp.eq.s32.totalorder %s17, 0
    %p184 = por %p182, %p183
    %p185 = scmp.ne.s32.totalorder %s177, %s179
    %p186 = scmp.eq.s32.totalorder %s22, 1
    %p187 = por %p185, %p186
    %p188 = scmp.ne.s32.totalorder %s179, %s180
    %p189 = scmp.eq.s32.totalorder %s22, 0
    %p190 = por %p188, %p189
    %p191 = scmp.ne.s32.totalorder %s179, %s180
    %p192 = scmp.eq.s32.totalorder %s23, 1
    %p193 = por %p191, %p192
    %p195 = scmp.ne.s32.totalorder %s180, %s194
    %p196 = scmp.eq.s32.totalorder %s23, 0
    %p197 = por %p195, %p196
    %s199 = sadd.s32 %s198, 1
    %p202 = scmp.eq.s32.totalorder %s17, 1
    %p203 = scmp.ne.s32.totalorder %s198, %s200
    %p204 = scmp.eq.s32.totalorder %s17, 0
    %p205 = por %p203, %p204
    %p206 = scmp.ne.s32.totalorder %s198, %s200
    %p207 = scmp.eq.s32.totalorder %s22, 1
    %p208 = por %p206, %p207
    %p209 = scmp.ne.s32.totalorder %s200, %s201
    %p210 = scmp.eq.s32.totalorder %s22, 0
    %p211 = por %p209, %p210
    %p212 = scmp.ne.s32.totalorder %s200, %s201
    %p213 = scmp.eq.s32.totalorder %s23, 1
    %p214 = por %p212, %p213
    %p216 = scmp.ne.s32.totalorder %s201, %s215
    %p217 = scmp.eq.s32.totalorder %s23, 0
    %p218 = por %p216, %p217
    %s220 = sadd.s32 %s219, 1
    %p223 = scmp.eq.s32.totalorder %s17, 1
    %p224 = scmp.ne.s32.totalorder %s219, %s221
    %p225 = scmp.eq.s32.totalorder %s17, 0
    %p226 = por %p224, %p225
    %p227 = scmp.ne.s32.totalorder %s219, %s221
    %p228 = scmp.eq.s32.totalorder %s22, 1
    %p229 = por %p227, %p228
    %p230 = scmp.ne.s32.totalorder %s221, %s222
    %p231 = scmp.eq.s32.totalorder %s22, 0
    %p232 = por %p230, %p231
    %p233 = scmp.ne.s32.totalorder %s221, %s222
    %p234 = scmp.eq.s32.totalorder %s23, 1
    %p235 = por %p233, %p234
    %p237 = scmp.ne.s32.totalorder %s222, %s236
    %p238 = scmp.eq.s32.totalorder %s23, 0
    %p239 = por %p237, %p238
    %s241 = sadd.s32 %s240, 1
    %p244 = scmp.eq.s32.totalorder %s17, 1
    %p245 = scmp.ne.s32.totalorder %s240, %s242
    %p246 = scmp.eq.s32.totalorder %s17, 0
    %p247 = por %p245, %p246
    %p248 = scmp.ne.s32.totalorder %s240, %s242
    %p249 = scmp.eq.s32.totalorder %s22, 1
    %p250 = por %p248, %p249
    %p251 = scmp.ne.s32.totalorder %s242, %s243
    %p252 = scmp.eq.s32.totalorder %s22, 0
    %p253 = por %p251, %p252
    %p254 = scmp.ne.s32.totalorder %s242, %s243
    %p255 = scmp.eq.s32.totalorder %s23, 1
    %p256 = por %p254, %p255
    %p258 = scmp.ne.s32.totalorder %s243, %s257
    %p259 = scmp.eq.s32.totalorder %s23, 0
    %p260 = por %p258, %p259
    %s261 = ssub.s32 %s17, %s24
    %p262 = scmp.eq.s32.totalorder %s261, 0
    %s264 = sadd.s32 %s263, 1
    %s265 = scalar_select %p262, %s263, %s264
    %p268 = pneg %p262
    %p269 = scmp.eq.s32.totalorder %s17, 1
    %p270 = por %p268, %p269
    %p271 = scmp.ne.s32.totalorder %s263, %s266
    %p272 = scmp.eq.s32.totalorder %s17, 0
    %p273 = por %p271, %p272
    %p274 = scmp.ne.s32.totalorder %s263, %s266
    %p275 = scmp.eq.s32.totalorder %s22, 1
    %p276 = por %p274, %p275
    %p277 = scmp.ne.s32.totalorder %s266, %s267
    %p278 = scmp.eq.s32.totalorder %s22, 0
    %p279 = por %p277, %p278
    %p280 = scmp.ne.s32.totalorder %s266, %s267
    %p281 = scmp.eq.s32.totalorder %s23, 1
    %p282 = por %p280, %p281
    %p284 = scmp.ne.s32.totalorder %s267, %s283
    %p285 = scmp.eq.s32.totalorder %s23, 0
    %p286 = por %p284, %p285
    %p287 = scmp.le.s32.totalorder 1, %s17
    %p288 = scmp.lt.s32.totalorder %s17, 3
    %p289 = pnand %p287, %p288
    %p290 = pneg %p289
    // Predicated region
    $region9: #{mlp_forward.1} parent=5 // pred_check
      _
    $region10: #{mlp_forward.1} parent=5 // pred_check_branch
      %292 = sbr.rel (%p289) target = $region12
    $region11: #{mlp_forward.1} parent=5 // pred_region
      %s293 = ssub.s32 %s17, 1
      // Predicated region
      $region13: #{mlp_forward.1} parent=11 // pred_check
        %p294 = pneg %p64
      $region14: #{mlp_forward.1} parent=11 // pred_check_branch
        %296 = sbr.rel (%p294) target = $region16
      $region15: #{mlp_forward.1} parent=11 // pred_region
        _
      $region16: #{mlp_forward.1} parent=11 // pred_fallthru
        _
      // Predicated region
      $region17: #{mlp_forward.1} parent=11 // pred_check
        %p297 = pneg %p85
      $region18: #{mlp_forward.1} parent=11 // pred_check_branch
        %299 = sbr.rel (%p297) target = $region20
      $region19: #{mlp_forward.1} parent=11 // pred_region
        _
      $region20: #{mlp_forward.1} parent=11 // pred_fallthru
        _
      // Predicated region
      $region21: #{mlp_forward.1} parent=11 // pred_check
        %p300 = pneg %p106
      $region22: #{mlp_forward.1} parent=11 // pred_check_branch
        %302 = sbr.rel (%p300) target = $region24
      $region23: #{mlp_forward.1} parent=11 // pred_region
        _
      $region24: #{mlp_forward.1} parent=11 // pred_fallthru
        _
      // Predicated region
      $region25: #{mlp_forward.1} parent=11 // pred_check
        %p303 = pneg %p127
      $region26: #{mlp_forward.1} parent=11 // pred_check_branch
        %305 = sbr.rel (%p303) target = $region28
      $region27: #{mlp_forward.1} parent=11 // pred_region
        _
      $region28: #{mlp_forward.1} parent=11 // pred_fallthru
        _
      // Predicated region
      $region29: #{mlp_forward.1} parent=11 // pred_check
        %p306 = pneg %p148
      $region30: #{mlp_forward.1} parent=11 // pred_check_branch
        %308 = sbr.rel (%p306) target = $region32
      $region31: #{mlp_forward.1} parent=11 // pred_region
        _
      $region32: #{mlp_forward.1} parent=11 // pred_fallthru
        _
      // Predicated region
      $region33: #{mlp_forward.1} parent=11 // pred_check
        %p309 = pneg %p169
      $region34: #{mlp_forward.1} parent=11 // pred_check_branch
        %311 = sbr.rel (%p309) target = $region36
      $region35: #{mlp_forward.1} parent=11 // pred_region
        _
      $region36: #{mlp_forward.1} parent=11 // pred_fallthru
        _
      // Predicated region
      $region37: #{mlp_forward.1} parent=11 // pred_check
        %p312 = pneg %p190
      $region38: #{mlp_forward.1} parent=11 // pred_check_branch
        %314 = sbr.rel (%p312) target = $region40
      $region39: #{mlp_forward.1} parent=11 // pred_region
        _
      $region40: #{mlp_forward.1} parent=11 // pred_fallthru
        _
      // Predicated region
      $region41: #{mlp_forward.1} parent=11 // pred_check
        %p315 = pneg %p211
      $region42: #{mlp_forward.1} parent=11 // pred_check_branch
        %317 = sbr.rel (%p315) target = $region44
      $region43: #{mlp_forward.1} parent=11 // pred_region
        _
      $region44: #{mlp_forward.1} parent=11 // pred_fallthru
        _
      // Predicated region
      $region45: #{mlp_forward.1} parent=11 // pred_check
        %p318 = pneg %p232
      $region46: #{mlp_forward.1} parent=11 // pred_check_branch
        %320 = sbr.rel (%p318) target = $region48
      $region47: #{mlp_forward.1} parent=11 // pred_region
        _
      $region48: #{mlp_forward.1} parent=11 // pred_fallthru
        _
      // Predicated region
      $region49: #{mlp_forward.1} parent=11 // pred_check
        %p321 = pneg %p253
      $region50: #{mlp_forward.1} parent=11 // pred_check_branch
        %323 = sbr.rel (%p321) target = $region52
      $region51: #{mlp_forward.1} parent=11 // pred_region
        _
      $region52: #{mlp_forward.1} parent=11 // pred_fallthru
        _
    $region12: #{mlp_forward.1} parent=5 // pred_fallthru
      _
    %p324 = scmp.lt.s32.totalorder %s17, 2
    // Predicated region
    $region53: #{mlp_forward.1} parent=5 // pred_check
      %p325 = pneg %p324
    $region54: #{mlp_forward.1} parent=5 // pred_check_branch
      %327 = sbr.rel (%p325) target = $region56
    $region55: #{mlp_forward.1} parent=5 // pred_region
      // Predicated region
      $region57: #{mlp_forward.1} parent=55 // pred_check
        %p328 = pneg %p37
      $region58: #{mlp_forward.1} parent=55 // pred_check_branch
        %330 = sbr.rel (%p328) target = $region60
      $region59: #{mlp_forward.1} parent=55 // pred_region
        %p331 = scmp.lt.s32.totalorder %s17, 1
        %s332 = scalar_select %p331, %s17, 1
        %s333 = smul.addr %s332, 7
        %s334 = smul.addr %s333, 8
        %s335 = scalar_lea.vmem %s0, %s334
      $region60: #{mlp_forward.1} parent=55 // pred_fallthru
        _
    $region56: #{mlp_forward.1} parent=5 // pred_fallthru
      _
    %p336 = scmp.le.s32.totalorder 1, %s17
    %p337 = scmp.lt.s32.totalorder %s17, 3
    %p338 = pnand %p336, %p337
    %p339 = pneg %p338
    // Predicated region
    $region61: #{mlp_forward.1} parent=5 // pred_check
      _
    $region62: #{mlp_forward.1} parent=5 // pred_check_branch
      %341 = sbr.rel (%p338) target = $region64
    $region63: #{mlp_forward.1} parent=5 // pred_region
      %s342 = ssub.s32 %s17, 1
      %p343 = scmp.lt.s32.totalorder %s22, 1
      %s344 = scalar_select %p343, %s22, 1
      %s345 = smul.addr %s344, 7
      %s346 = smul.addr %s345, 8
      %s347 = scalar_lea.vmem %s0, %s346
      %p348 = pneg %p43
      %p349 = pneg %p40
      %p350 = pneg %p64
      %p351 = pneg %p61
      %p352 = pneg %p85
      %p353 = pneg %p82
      %p354 = pneg %p106
      %p355 = pneg %p103
      %p356 = pneg %p127
      %p357 = pneg %p124
      %p358 = pneg %p148
      %p359 = pneg %p145
      %p360 = pneg %p169
      %p361 = pneg %p166
      %p362 = pneg %p190
      %p363 = pneg %p187
      %p364 = pneg %p211
      %p365 = pneg %p208
      %p366 = pneg %p232
      %p367 = pneg %p229
      %p368 = pneg %p253
      %p369 = pneg %p250
      %p370 = pneg %p279
      %p371 = pneg %p276
      %p372 = scmp.lt.s32.totalorder %s22, 1
      %s373 = scalar_select %p372, %s22, 1
      %s374 = smul.addr %s373, 4
      %s375 = scalar_lea.vmem %s11, %s374
      %p376 = scmp.lt.s32.totalorder %s22, 1
      %s377 = scalar_select %p376, %s22, 1
      %s378 = smul.addr %s377, 7
      %s379 = smul.addr %s378, 8
      %s380 = scalar_lea.vmem %s0, %s379
      %p381 = scmp.lt.s32.totalorder %s22, 1
      %s382 = scalar_select %p381, %s22, 1
      %s383 = smul.addr %s382, 4
      %s384 = scalar_lea.vmem %s11, %s383
      %v386 = vld [vmem:[%s380] sm:$0xff]
      %v387 = vld [vmem:[%s380 + $0x8] sm:$0xff]
      %v388 = vld [vmem:[%s380 + $0x10] sm:$0xff]
      %v389 = vld [vmem:[%s380 + $0x18] sm:$0xff]
      %v390 = vld [vmem:[%s380 + $0x20] sm:$0xff]
      %v391 = vld [vmem:[%s380 + $0x28] sm:$0xff]
      %v392 = vld [vmem:[%s380 + $0x30] sm:$0xff]
      %v393 = vpack.c.bf16 %v386, %v386
      %v394 = vpack.c.bf16 %v387, %v387
      %v395 = vpack.c.bf16 %v388, %v388
      %v396 = vpack.c.bf16 %v389, %v389
      %v397 = vpack.c.bf16 %v390, %v390
      %v398 = vpack.c.bf16 %v391, %v391
      %v399 = vpack.c.bf16 %v392, %v392
      %v400 = vld [vmem:[%s1] sm:$0xff]
      %v401 = vld [vmem:[%s1 + $0x8] sm:$0xff]
      %v402 = vld [vmem:[%s1 + $0x10] sm:$0xff]
      %v403 = vld [vmem:[%s1 + $0x18] sm:$0xff]
      %v404 = vld [vmem:[%s1 + $0x20] sm:$0xff]
      %v405 = vld [vmem:[%s1 + $0x28] sm:$0xff]
      %v406 = vld [vmem:[%s1 + $0x30] sm:$0xff]
      %v407 = vld [vmem:[%s1 + $0x38] sm:$0xff]
      %v408 = vld [vmem:[%s1 + $0x40] sm:$0xff]
      %v409 = vld [vmem:[%s1 + $0x48] sm:$0xff]
      %v410 = vld [vmem:[%s1 + $0x50] sm:$0xff]
      %v411 = vld [vmem:[%s1 + $0x58] sm:$0xff]
      %v412 = vld [vmem:[%s1 + $0x60] sm:$0xff]
      %v413 = vld [vmem:[%s1 + $0x68] sm:$0xff]
      %v414 = vld [vmem:[%s1 + $0x70] sm:$0xff]
      %v415 = vld [vmem:[%s1 + $0x78] sm:$0xff]
      %v416 = vld [vmem:[%s1 + $0x80] sm:$0xff]
      %v417 = vld [vmem:[%s1 + $0x88] sm:$0xff]
      %v418 = vld [vmem:[%s1 + $0x90] sm:$0xff]
      %v419 = vld [vmem:[%s1 + $0x98] sm:$0xff]
      %v420 = vld [vmem:[%s1 + $0xa0] sm:$0xff]
      %v421 = vld [vmem:[%s1 + $0xa8] sm:$0xff]
      %v422 = vld [vmem:[%s1 + $0xb0] sm:$0xff]
      %v423 = vld [vmem:[%s1 + $0xb8] sm:$0xff]
      %v424 = vld [vmem:[%s1 + $0xc0] sm:$0xff]
      %v425 = vld [vmem:[%s1 + $0xc8] sm:$0xff]
      %v426 = vld [vmem:[%s1 + $0xd0] sm:$0xff]
      %v427 = vld [vmem:[%s1 + $0xd8] sm:$0xff]
      %v428 = vld [vmem:[%s1 + $0xe0] sm:$0xff]
      %v429 = vld [vmem:[%s1 + $0xe8] sm:$0xff]
      %v430 = vld [vmem:[%s1 + $0xf0] sm:$0xff]
      %v431 = vld [vmem:[%s1 + $0xf8] sm:$0xff]
      %v432 = vld [vmem:[%s1 + $0x100] sm:$0xff]
      %v433 = vld [vmem:[%s1 + $0x108] sm:$0xff]
      %v434 = vld [vmem:[%s1 + $0x110] sm:$0xff]
      %v435 = vld [vmem:[%s1 + $0x118] sm:$0xff]
      %v436 = vld [vmem:[%s1 + $0x120] sm:$0xff]
      %v437 = vld [vmem:[%s1 + $0x128] sm:$0xff]
      %v438 = vld [vmem:[%s1 + $0x130] sm:$0xff]
      %v439 = vld [vmem:[%s1 + $0x138] sm:$0xff]
      %v440 = vld [vmem:[%s1 + $0x140] sm:$0xff]
      %v441 = vld [vmem:[%s1 + $0x148] sm:$0xff]
      %v442 = vld [vmem:[%s1 + $0x150] sm:$0xff]
      %v443 = vld [vmem:[%s1 + $0x158] sm:$0xff]
      %v444 = vld [vmem:[%s1 + $0x160] sm:$0xff]
      %v445 = vld [vmem:[%s1 + $0x168] sm:$0xff]
      %v446 = vld [vmem:[%s1 + $0x170] sm:$0xff]
      %v447 = vld [vmem:[%s1 + $0x178] sm:$0xff]
      %v448 = vld [vmem:[%s1 + $0x180] sm:$0xff]
      %v449 = vld [vmem:[%s1 + $0x188] sm:$0xff]
      %v450 = vld [vmem:[%s1 + $0x190] sm:$0xff]
      %v451 = vld [vmem:[%s1 + $0x198] sm:$0xff]
      %v452 = vld [vmem:[%s1 + $0x1a0] sm:$0xff]
      %v453 = vld [vmem:[%s1 + $0x1a8] sm:$0xff]
      %v454 = vld [vmem:[%s1 + $0x1b0] sm:$0xff]
      %v455 = vld [vmem:[%s1 + $0x1b8] sm:$0xff]
      %v456 = vld [vmem:[%s1 + $0x1c0] sm:$0xff]
      %v457 = vld [vmem:[%s1 + $0x1c8] sm:$0xff]
      %v458 = vld [vmem:[%s1 + $0x1d0] sm:$0xff]
      %v459 = vld [vmem:[%s1 + $0x1d8] sm:$0xff]
      %v460 = vld [vmem:[%s1 + $0x1e0] sm:$0xff]
      %v461 = vld [vmem:[%s1 + $0x1e8] sm:$0xff]
      %v462 = vld [vmem:[%s1 + $0x1f0] sm:$0xff]
      %v463 = vld [vmem:[%s1 + $0x1f8] sm:$0xff]
      %v464 = vld [vmem:[%s1 + $0x200] sm:$0xff]
      %v465 = vld [vmem:[%s1 + $0x208] sm:$0xff]
      %v466 = vld [vmem:[%s1 + $0x210] sm:$0xff]
      %v467 = vld [vmem:[%s1 + $0x218] sm:$0xff]
      %v468 = vld [vmem:[%s1 + $0x220] sm:$0xff]
      %v469 = vld [vmem:[%s1 + $0x228] sm:$0xff]
      %v470 = vld [vmem:[%s1 + $0x230] sm:$0xff]
      %v471 = vld [vmem:[%s1 + $0x238] sm:$0xff]
      %v472 = vld [vmem:[%s1 + $0x240] sm:$0xff]
      %v473 = vld [vmem:[%s1 + $0x248] sm:$0xff]
      %v474 = vld [vmem:[%s1 + $0x250] sm:$0xff]
      %v475 = vld [vmem:[%s1 + $0x258] sm:$0xff]
      %v476 = vld [vmem:[%s1 + $0x260] sm:$0xff]
      %v477 = vld [vmem:[%s1 + $0x268] sm:$0xff]
      %v478 = vld [vmem:[%s1 + $0x270] sm:$0xff]
      %v479 = vld [vmem:[%s1 + $0x278] sm:$0xff]
      %v480 = vld [vmem:[%s1 + $0x280] sm:$0xff]
      %v481 = vld [vmem:[%s1 + $0x288] sm:$0xff]
      %v482 = vld [vmem:[%s1 + $0x290] sm:$0xff]
      %v483 = vld [vmem:[%s1 + $0x298] sm:$0xff]
      %v484 = vld [vmem:[%s1 + $0x2a0] sm:$0xff]
      %v485 = vld [vmem:[%s1 + $0x2a8] sm:$0xff]
      %v486 = vld [vmem:[%s1 + $0x2b0] sm:$0xff]
      %v487 = vld [vmem:[%s1 + $0x2b8] sm:$0xff]
      %v488 = vld [vmem:[%s1 + $0x2c0] sm:$0xff]
      %v489 = vld [vmem:[%s1 + $0x2c8] sm:$0xff]
      %v490 = vld [vmem:[%s1 + $0x2d0] sm:$0xff]
      %v491 = vld [vmem:[%s1 + $0x2d8] sm:$0xff]
      %v492 = vld [vmem:[%s1 + $0x2e0] sm:$0xff]
      %v493 = vld [vmem:[%s1 + $0x2e8] sm:$0xff]
      %v494 = vld [vmem:[%s1 + $0x2f0] sm:$0xff]
      %v495 = vld [vmem:[%s1 + $0x2f8] sm:$0xff]
      %v496 = vld [vmem:[%s1 + $0x300] sm:$0xff]
      %v497 = vld [vmem:[%s1 + $0x308] sm:$0xff]
      %v498 = vld [vmem:[%s1 + $0x310] sm:$0xff]
      %v499 = vld [vmem:[%s1 + $0x318] sm:$0xff]
      %v500 = vld [vmem:[%s1 + $0x320] sm:$0xff]
      %v501 = vld [vmem:[%s1 + $0x328] sm:$0xff]
      %v502 = vld [vmem:[%s1 + $0x330] sm:$0xff]
      %v503 = vld [vmem:[%s1 + $0x338] sm:$0xff]
      %v504 = vld [vmem:[%s1 + $0x340] sm:$0xff]
      %v505 = vld [vmem:[%s1 + $0x348] sm:$0xff]
      %v506 = vld [vmem:[%s1 + $0x350] sm:$0xff]
      %v507 = vld [vmem:[%s1 + $0x358] sm:$0xff]
      %v508 = vld [vmem:[%s1 + $0x360] sm:$0xff]
      %v509 = vld [vmem:[%s1 + $0x368] sm:$0xff]
      %v510 = vld [vmem:[%s1 + $0x370] sm:$0xff]
      %v511 = vld [vmem:[%s1 + $0x378] sm:$0xff]
      %v512 = vld [vmem:[%s1 + $0x380] sm:$0xff]
      %v513 = vld [vmem:[%s1 + $0x388] sm:$0xff]
      %v514 = vld [vmem:[%s1 + $0x390] sm:$0xff]
      %v515 = vld [vmem:[%s1 + $0x398] sm:$0xff]
      %v516 = vld [vmem:[%s1 + $0x3a0] sm:$0xff]
      %v517 = vld [vmem:[%s1 + $0x3a8] sm:$0xff]
      %v518 = vld [vmem:[%s1 + $0x3b0] sm:$0xff]
      %v519 = vld [vmem:[%s1 + $0x3b8] sm:$0xff]
      %v520 = vld [vmem:[%s1 + $0x3c0] sm:$0xff]
      %v521 = vld [vmem:[%s1 + $0x3c8] sm:$0xff]
      %v522 = vld [vmem:[%s1 + $0x3d0] sm:$0xff]
      %v523 = vld [vmem:[%s1 + $0x3d8] sm:$0xff]
      %v524 = vld [vmem:[%s1 + $0x3e0] sm:$0xff]
      %v525 = vld [vmem:[%s1 + $0x3e8] sm:$0xff]
      %v526 = vld [vmem:[%s1 + $0x3f0] sm:$0xff]
      %v527 = vld [vmem:[%s1 + $0x3f8] sm:$0xff]
      %v528 = vld [vmem:[%s1 + $0x400] sm:$0xff]
      %v529 = vld [vmem:[%s1 + $0x408] sm:$0xff]
      %v530 = vld [vmem:[%s1 + $0x410] sm:$0xff]
      %v531 = vld [vmem:[%s1 + $0x418] sm:$0xff]
      %v532 = vld [vmem:[%s1 + $0x420] sm:$0xff]
      %v533 = vld [vmem:[%s1 + $0x428] sm:$0xff]
      %v534 = vld [vmem:[%s1 + $0x430] sm:$0xff]
      %v535 = vld [vmem:[%s1 + $0x438] sm:$0xff]
      %v536 = vld [vmem:[%s1 + $0x440] sm:$0xff]
      %v537 = vld [vmem:[%s1 + $0x448] sm:$0xff]
      %v538 = vld [vmem:[%s1 + $0x450] sm:$0xff]
      %v539 = vld [vmem:[%s1 + $0x458] sm:$0xff]
      %v540 = vld [vmem:[%s1 + $0x460] sm:$0xff]
      %v541 = vld [vmem:[%s1 + $0x468] sm:$0xff]
      %v542 = vld [vmem:[%s1 + $0x470] sm:$0xff]
      %v543 = vld [vmem:[%s1 + $0x478] sm:$0xff]
      %v544 = vld [vmem:[%s1 + $0x480] sm:$0xff]
      %v545 = vld [vmem:[%s1 + $0x488] sm:$0xff]
      %v546 = vld [vmem:[%s1 + $0x490] sm:$0xff]
      %v547 = vld [vmem:[%s1 + $0x498] sm:$0xff]
      %v548 = vld [vmem:[%s1 + $0x4a0] sm:$0xff]
      %v549 = vld [vmem:[%s1 + $0x4a8] sm:$0xff]
      %v550 = vld [vmem:[%s1 + $0x4b0] sm:$0xff]
      %v551 = vld [vmem:[%s1 + $0x4b8] sm:$0xff]
      %v552 = vld [vmem:[%s1 + $0x4c0] sm:$0xff]
      %v553 = vld [vmem:[%s1 + $0x4c8] sm:$0xff]
      %v554 = vld [vmem:[%s1 + $0x4d0] sm:$0xff]
      %v555 = vld [vmem:[%s1 + $0x4d8] sm:$0xff]
      %v556 = vld [vmem:[%s1 + $0x4e0] sm:$0xff]
      %v557 = vld [vmem:[%s1 + $0x4e8] sm:$0xff]
      %v558 = vld [vmem:[%s1 + $0x4f0] sm:$0xff]
      %v559 = vld [vmem:[%s1 + $0x4f8] sm:$0xff]
      %v560 = vld [vmem:[%s1 + $0x500] sm:$0xff]
      %v561 = vld [vmem:[%s1 + $0x508] sm:$0xff]
      %v562 = vld [vmem:[%s1 + $0x510] sm:$0xff]
      %v563 = vld [vmem:[%s1 + $0x518] sm:$0xff]
      %v564 = vld [vmem:[%s1 + $0x520] sm:$0xff]
      %v565 = vld [vmem:[%s1 + $0x528] sm:$0xff]
      %v566 = vld [vmem:[%s1 + $0x530] sm:$0xff]
      %v567 = vld [vmem:[%s1 + $0x538] sm:$0xff]
      %v568 = vld [vmem:[%s1 + $0x540] sm:$0xff]
      %v569 = vld [vmem:[%s1 + $0x548] sm:$0xff]
      %v570 = vld [vmem:[%s1 + $0x550] sm:$0xff]
      %v571 = vld [vmem:[%s1 + $0x558] sm:$0xff]
      %v572 = vld [vmem:[%s1 + $0x560] sm:$0xff]
      %v573 = vld [vmem:[%s1 + $0x568] sm:$0xff]
      %v574 = vld [vmem:[%s1 + $0x570] sm:$0xff]
      %v575 = vld [vmem:[%s1 + $0x578] sm:$0xff]
      %v576 = vld [vmem:[%s1 + $0x580] sm:$0xff]
      %v577 = vld [vmem:[%s1 + $0x588] sm:$0xff]
      %v578 = vld [vmem:[%s1 + $0x590] sm:$0xff]
      %v579 = vld [vmem:[%s1 + $0x598] sm:$0xff]
      %v580 = vld [vmem:[%s1 + $0x5a0] sm:$0xff]
      %v581 = vld [vmem:[%s1 + $0x5a8] sm:$0xff]
      %v582 = vld [vmem:[%s1 + $0x5b0] sm:$0xff]
      %v583 = vld [vmem:[%s1 + $0x5b8] sm:$0xff]
      %v584 = vld [vmem:[%s1 + $0x5c0] sm:$0xff]
      %v585 = vld [vmem:[%s1 + $0x5c8] sm:$0xff]
      %v586 = vld [vmem:[%s1 + $0x5d0] sm:$0xff]
      %v587 = vld [vmem:[%s1 + $0x5d8] sm:$0xff]
      %v588 = vld [vmem:[%s1 + $0x5e0] sm:$0xff]
      %v589 = vld [vmem:[%s1 + $0x5e8] sm:$0xff]
      %v590 = vld [vmem:[%s1 + $0x5f0] sm:$0xff]
      %v591 = vld [vmem:[%s1 + $0x5f8] sm:$0xff]
      %v592 = vld [vmem:[%s1 + $0x600] sm:$0xff]
      %v593 = vld [vmem:[%s1 + $0x608] sm:$0xff]
      %v594 = vld [vmem:[%s1 + $0x610] sm:$0xff]
      %v595 = vld [vmem:[%s1 + $0x618] sm:$0xff]
      %v596 = vld [vmem:[%s2] sm:$0xf]
      %v598 = vlaneseq
      %v599 = vshrl.u32 %v598, 7
      %v600 = vsub.s32 0, %v599
      %v601 = vrot.slane %v596, %v600
      %v602 = vlaneseq
      %v603 = vshrl.u32 %v602, 7
      %v604 = vsub.s32 1, %v603
      %v605 = vrot.slane %v596, %v604
      %v606 = vlaneseq
      %v607 = vshrl.u32 %v606, 7
      %v608 = vsub.s32 2, %v607
      %v609 = vrot.slane %v596, %v608
      %v610 = vlaneseq
      %v611 = vshrl.u32 %v610, 7
      %v612 = vsub.s32 3, %v611
      %v613 = vrot.slane %v596, %v612
      %v814 = vunpack.c.l.b16 %v400
      %v815 = vunpack.c.h.b16 %v400
      %v816 = vunpack.c.l.b16 %v401
      %v817 = vunpack.c.h.b16 %v401
      %v818 = vunpack.c.l.b16 %v402
      %v819 = vunpack.c.h.b16 %v402
      %v820 = vunpack.c.l.b16 %v403
      %v821 = vunpack.c.h.b16 %v403
      %v822 = vunpack.c.l.b16 %v404
      %v823 = vunpack.c.h.b16 %v404
      %v824 = vunpack.c.l.b16 %v405
      %v825 = vunpack.c.h.b16 %v405
      %v826 = vunpack.c.l.b16 %v406
      %v827 = vunpack.c.h.b16 %v406
      %v828 = vunpack.c.l.b16 %v407
      %v829 = vunpack.c.h.b16 %v407
      %v830 = vunpack.c.l.b16 %v408
      %v831 = vunpack.c.h.b16 %v408
      %v832 = vunpack.c.l.b16 %v409
      %v833 = vunpack.c.h.b16 %v409
      %v834 = vunpack.c.l.b16 %v410
      %v835 = vunpack.c.h.b16 %v410
      %v836 = vunpack.c.l.b16 %v411
      %v837 = vunpack.c.h.b16 %v411
      %v838 = vunpack.c.l.b16 %v412
      %v839 = vunpack.c.h.b16 %v412
      %v840 = vunpack.c.l.b16 %v413
      %v841 = vunpack.c.h.b16 %v413
      %v842 = vunpack.c.l.b16 %v414
      %v843 = vunpack.c.h.b16 %v414
      %v844 = vunpack.c.l.b16 %v415
      %v845 = vunpack.c.h.b16 %v415
      %v846 = vunpack.c.l.b16 %v416
      %v847 = vunpack.c.h.b16 %v416
      %v848 = vunpack.c.l.b16 %v417
      %v849 = vunpack.c.h.b16 %v417
      %v850 = vunpack.c.l.b16 %v418
      %v851 = vunpack.c.h.b16 %v418
      %v852 = vunpack.c.l.b16 %v419
      %v853 = vunpack.c.h.b16 %v419
      %v854 = vunpack.c.l.b16 %v420
      %v855 = vunpack.c.h.b16 %v420
      %v856 = vunpack.c.l.b16 %v421
      %v857 = vunpack.c.h.b16 %v421
      %v858 = vunpack.c.l.b16 %v422
      %v859 = vunpack.c.h.b16 %v422
      %v860 = vunpack.c.l.b16 %v423
      %v861 = vunpack.c.h.b16 %v423
      %v862 = vunpack.c.l.b16 %v424
      %v863 = vunpack.c.h.b16 %v424
      %v864 = vunpack.c.l.b16 %v425
      %v865 = vunpack.c.h.b16 %v425
      %v866 = vunpack.c.l.b16 %v426
      %v867 = vunpack.c.h.b16 %v426
      %v868 = vunpack.c.l.b16 %v427
      %v869 = vunpack.c.h.b16 %v427
      %v870 = vunpack.c.l.b16 %v428
      %v871 = vunpack.c.h.b16 %v428
      %v872 = vunpack.c.l.b16 %v429
      %v873 = vunpack.c.h.b16 %v429
      %v874 = vunpack.c.l.b16 %v430
      %v875 = vunpack.c.h.b16 %v430
      %v876 = vunpack.c.l.b16 %v431
      %v877 = vunpack.c.h.b16 %v431
      %v878 = vunpack.c.l.b16 %v432
      %v879 = vunpack.c.h.b16 %v432
      %v880 = vunpack.c.l.b16 %v433
      %v881 = vunpack.c.h.b16 %v433
      %v882 = vunpack.c.l.b16 %v434
      %v883 = vunpack.c.h.b16 %v434
      %v884 = vunpack.c.l.b16 %v435
      %v885 = vunpack.c.h.b16 %v435
      %v886 = vunpack.c.l.b16 %v436
      %v887 = vunpack.c.h.b16 %v436
      %v888 = vunpack.c.l.b16 %v437
      %v889 = vunpack.c.h.b16 %v437
      %v890 = vunpack.c.l.b16 %v438
      %v891 = vunpack.c.h.b16 %v438
      %v892 = vunpack.c.l.b16 %v439
      %v893 = vunpack.c.h.b16 %v439
      %v894 = vunpack.c.l.b16 %v440
      %v895 = vunpack.c.h.b16 %v440
      %v896 = vunpack.c.l.b16 %v441
      %v897 = vunpack.c.h.b16 %v441
      %v898 = vunpack.c.l.b16 %v442
      %v899 = vunpack.c.h.b16 %v442
      %v900 = vunpack.c.l.b16 %v443
      %v901 = vunpack.c.h.b16 %v443
      %v902 = vunpack.c.l.b16 %v444
      %v903 = vunpack.c.h.b16 %v444
      %v904 = vunpack.c.l.b16 %v445
      %v905 = vunpack.c.h.b16 %v445
      %v906 = vunpack.c.l.b16 %v446
      %v907 = vunpack.c.h.b16 %v446
      %v908 = vunpack.c.l.b16 %v447
      %v909 = vunpack.c.h.b16 %v447
      %v910 = vunpack.c.l.b16 %v448
      %v911 = vunpack.c.h.b16 %v448
      %v912 = vunpack.c.l.b16 %v449
      %v913 = vunpack.c.h.b16 %v449
      %v914 = vunpack.c.l.b16 %v450
      %v915 = vunpack.c.h.b16 %v450
      %v916 = vunpack.c.l.b16 %v451
      %v917 = vunpack.c.h.b16 %v451
      %v918 = vunpack.c.l.b16 %v452
      %v919 = vunpack.c.h.b16 %v452
      %v920 = vunpack.c.l.b16 %v453
      %v921 = vunpack.c.h.b16 %v453
      %v922 = vunpack.c.l.b16 %v454
      %v923 = vunpack.c.h.b16 %v454
      %v924 = vunpack.c.l.b16 %v455
      %v925 = vunpack.c.h.b16 %v455
      %v926 = vunpack.c.l.b16 %v456
      %v927 = vunpack.c.h.b16 %v456
      %v928 = vunpack.c.l.b16 %v457
      %v929 = vunpack.c.h.b16 %v457
      %v930 = vunpack.c.l.b16 %v458
      %v931 = vunpack.c.h.b16 %v458
      %v932 = vunpack.c.l.b16 %v459
      %v933 = vunpack.c.h.b16 %v459
      %v934 = vunpack.c.l.b16 %v460
      %v935 = vunpack.c.h.b16 %v460
      %v936 = vunpack.c.l.b16 %v461
      %v937 = vunpack.c.h.b16 %v461
      %v938 = vunpack.c.l.b16 %v462
      %v939 = vunpack.c.h.b16 %v462
      %v940 = vunpack.c.l.b16 %v463
      %v941 = vunpack.c.h.b16 %v463
      %v942 = vunpack.c.l.b16 %v464
      %v943 = vunpack.c.h.b16 %v464
      %v944 = vunpack.c.l.b16 %v465
      %v945 = vunpack.c.h.b16 %v465
      %v946 = vunpack.c.l.b16 %v466
      %v947 = vunpack.c.h.b16 %v466
      %v948 = vunpack.c.l.b16 %v467
      %v949 = vunpack.c.h.b16 %v467
      %v950 = vunpack.c.l.b16 %v468
      %v951 = vunpack.c.h.b16 %v468
      %v952 = vunpack.c.l.b16 %v469
      %v953 = vunpack.c.h.b16 %v469
      %v954 = vunpack.c.l.b16 %v470
      %v955 = vunpack.c.h.b16 %v470
      %v956 = vunpack.c.l.b16 %v471
      %v957 = vunpack.c.h.b16 %v471
      %v958 = vunpack.c.l.b16 %v472
      %v959 = vunpack.c.h.b16 %v472
      %v960 = vunpack.c.l.b16 %v473
      %v961 = vunpack.c.h.b16 %v473
      %v962 = vunpack.c.l.b16 %v474
      %v963 = vunpack.c.h.b16 %v474
      %v964 = vunpack.c.l.b16 %v475
      %v965 = vunpack.c.h.b16 %v475
      %v966 = vunpack.c.l.b16 %v476
      %v967 = vunpack.c.h.b16 %v476
      %v968 = vunpack.c.l.b16 %v477
      %v969 = vunpack.c.h.b16 %v477
      %v970 = vunpack.c.l.b16 %v478
      %v971 = vunpack.c.h.b16 %v478
      %v972 = vunpack.c.l.b16 %v479
      %v973 = vunpack.c.h.b16 %v479
      %v974 = vunpack.c.l.b16 %v480
      %v975 = vunpack.c.h.b16 %v480
      %v976 = vunpack.c.l.b16 %v481
      %v977 = vunpack.c.h.b16 %v481
      %v978 = vunpack.c.l.b16 %v482
      %v979 = vunpack.c.h.b16 %v482
      %v980 = vunpack.c.l.b16 %v483
      %v981 = vunpack.c.h.b16 %v483
      %v982 = vunpack.c.l.b16 %v484
      %v983 = vunpack.c.h.b16 %v484
      %v984 = vunpack.c.l.b16 %v485
      %v985 = vunpack.c.h.b16 %v485
      %v986 = vunpack.c.l.b16 %v486
      %v987 = vunpack.c.h.b16 %v486
      %v988 = vunpack.c.l.b16 %v487
      %v989 = vunpack.c.h.b16 %v487
      %v990 = vunpack.c.l.b16 %v488
      %v991 = vunpack.c.h.b16 %v488
      %v992 = vunpack.c.l.b16 %v489
      %v993 = vunpack.c.h.b16 %v489
      %v994 = vunpack.c.l.b16 %v490
      %v995 = vunpack.c.h.b16 %v490
      %v996 = vunpack.c.l.b16 %v491
      %v997 = vunpack.c.h.b16 %v491
      %v998 = vunpack.c.l.b16 %v492
      %v999 = vunpack.c.h.b16 %v492
      %v1000 = vunpack.c.l.b16 %v493
      %v1001 = vunpack.c.h.b16 %v493
      %v1002 = vunpack.c.l.b16 %v494
      %v1003 = vunpack.c.h.b16 %v494
      %v1004 = vunpack.c.l.b16 %v495
      %v1005 = vunpack.c.h.b16 %v495
      %v1006 = vunpack.c.l.b16 %v496
      %v1007 = vunpack.c.h.b16 %v496
      %v1008 = vunpack.c.l.b16 %v497
      %v1009 = vunpack.c.h.b16 %v497
      %v1010 = vunpack.c.l.b16 %v498
      %v1011 = vunpack.c.h.b16 %v498
      %v1012 = vunpack.c.l.b16 %v499
      %v1013 = vunpack.c.h.b16 %v499
      %v1014 = vunpack.c.l.b16 %v500
      %v1015 = vunpack.c.h.b16 %v500
      %v1016 = vunpack.c.l.b16 %v501
      %v1017 = vunpack.c.h.b16 %v501
      %v1018 = vunpack.c.l.b16 %v502
      %v1019 = vunpack.c.h.b16 %v502
      %v1020 = vunpack.c.l.b16 %v503
      %v1021 = vunpack.c.h.b16 %v503
      %v1022 = vunpack.c.l.b16 %v504
      %v1023 = vunpack.c.h.b16 %v504
      %v1024 = vunpack.c.l.b16 %v505
      %v1025 = vunpack.c.h.b16 %v505
      %v1026 = vunpack.c.l.b16 %v506
      %v1027 = vunpack.c.h.b16 %v506
      %v1028 = vunpack.c.l.b16 %v507
      %v1029 = vunpack.c.h.b16 %v507
      %v1030 = vunpack.c.l.b16 %v508
      %v1031 = vunpack.c.h.b16 %v508
      %v1032 = vunpack.c.l.b16 %v509
      %v1033 = vunpack.c.h.b16 %v509
      %v1034 = vunpack.c.l.b16 %v510
      %v1035 = vunpack.c.h.b16 %v510
      %v1036 = vunpack.c.l.b16 %v511
      %v1037 = vunpack.c.h.b16 %v511
      %v1038 = vunpack.c.l.b16 %v512
      %v1039 = vunpack.c.h.b16 %v512
      %v1040 = vunpack.c.l.b16 %v513
      %v1041 = vunpack.c.h.b16 %v513
      %v1042 = vunpack.c.l.b16 %v514
      %v1043 = vunpack.c.h.b16 %v514
      %v1044 = vunpack.c.l.b16 %v515
      %v1045 = vunpack.c.h.b16 %v515
      %v1046 = vunpack.c.l.b16 %v516
      %v1047 = vunpack.c.h.b16 %v516
      %v1048 = vunpack.c.l.b16 %v517
      %v1049 = vunpack.c.h.b16 %v517
      %v1050 = vunpack.c.l.b16 %v518
      %v1051 = vunpack.c.h.b16 %v518
      %v1052 = vunpack.c.l.b16 %v519
      %v1053 = vunpack.c.h.b16 %v519
      %v1054 = vunpack.c.l.b16 %v520
      %v1055 = vunpack.c.h.b16 %v520
      %v1056 = vunpack.c.l.b16 %v521
      %v1057 = vunpack.c.h.b16 %v521
      %v1058 = vunpack.c.l.b16 %v522
      %v1059 = vunpack.c.h.b16 %v522
      %v1060 = vunpack.c.l.b16 %v523
      %v1061 = vunpack.c.h.b16 %v523
      %v1062 = vunpack.c.l.b16 %v524
      %v1063 = vunpack.c.h.b16 %v524
      %v1064 = vunpack.c.l.b16 %v525
      %v1065 = vunpack.c.h.b16 %v525
      %v1066 = vunpack.c.l.b16 %v526
      %v1067 = vunpack.c.h.b16 %v526
      %v1068 = vunpack.c.l.b16 %v527
      %v1069 = vunpack.c.h.b16 %v527
      %v1070 = vunpack.c.l.b16 %v528
      %v1071 = vunpack.c.h.b16 %v528
      %v1072 = vunpack.c.l.b16 %v529
      %v1073 = vunpack.c.h.b16 %v529
      %v1074 = vunpack.c.l.b16 %v530
      %v1075 = vunpack.c.h.b16 %v530
      %v1076 = vunpack.c.l.b16 %v531
      %v1077 = vunpack.c.h.b16 %v531
      %v1078 = vunpack.c.l.b16 %v532
      %v1079 = vunpack.c.h.b16 %v532
      %v1080 = vunpack.c.l.b16 %v533
      %v1081 = vunpack.c.h.b16 %v533
      %v1082 = vunpack.c.l.b16 %v534
      %v1083 = vunpack.c.h.b16 %v534
      %v1084 = vunpack.c.l.b16 %v535
      %v1085 = vunpack.c.h.b16 %v535
      %v1086 = vunpack.c.l.b16 %v536
      %v1087 = vunpack.c.h.b16 %v536
      %v1088 = vunpack.c.l.b16 %v537
      %v1089 = vunpack.c.h.b16 %v537
      %v1090 = vunpack.c.l.b16 %v538
      %v1091 = vunpack.c.h.b16 %v538
      %v1092 = vunpack.c.l.b16 %v539
      %v1093 = vunpack.c.h.b16 %v539
      %v1094 = vunpack.c.l.b16 %v540
      %v1095 = vunpack.c.h.b16 %v540
      %v1096 = vunpack.c.l.b16 %v541
      %v1097 = vunpack.c.h.b16 %v541
      %v1098 = vunpack.c.l.b16 %v542
      %v1099 = vunpack.c.h.b16 %v542
      %v1100 = vunpack.c.l.b16 %v543
      %v1101 = vunpack.c.h.b16 %v543
      %v1102 = vunpack.c.l.b16 %v544
      %v1103 = vunpack.c.h.b16 %v544
      %v1104 = vunpack.c.l.b16 %v545
      %v1105 = vunpack.c.h.b16 %v545
      %v1106 = vunpack.c.l.b16 %v546
      %v1107 = vunpack.c.h.b16 %v546
      %v1108 = vunpack.c.l.b16 %v547
      %v1109 = vunpack.c.h.b16 %v547
      %v1110 = vunpack.c.l.b16 %v548
      %v1111 = vunpack.c.h.b16 %v548
      %v1112 = vunpack.c.l.b16 %v549
      %v1113 = vunpack.c.h.b16 %v549
      %v1114 = vunpack.c.l.b16 %v550
      %v1115 = vunpack.c.h.b16 %v550
      %v1116 = vunpack.c.l.b16 %v551
      %v1117 = vunpack.c.h.b16 %v551
      %v1118 = vunpack.c.l.b16 %v552
      %v1119 = vunpack.c.h.b16 %v552
      %v1120 = vunpack.c.l.b16 %v553
      %v1121 = vunpack.c.h.b16 %v553
      %v1122 = vunpack.c.l.b16 %v554
      %v1123 = vunpack.c.h.b16 %v554
      %v1124 = vunpack.c.l.b16 %v555
      %v1125 = vunpack.c.h.b16 %v555
      %v1126 = vunpack.c.l.b16 %v556
      %v1127 = vunpack.c.h.b16 %v556
      %v1128 = vunpack.c.l.b16 %v557
      %v1129 = vunpack.c.h.b16 %v557
      %v1130 = vunpack.c.l.b16 %v558
      %v1131 = vunpack.c.h.b16 %v558
      %v1132 = vunpack.c.l.b16 %v559
      %v1133 = vunpack.c.h.b16 %v559
      %v1134 = vunpack.c.l.b16 %v560
      %v1135 = vunpack.c.h.b16 %v560
      %v1136 = vunpack.c.l.b16 %v561
      %v1137 = vunpack.c.h.b16 %v561
      %v1138 = vunpack.c.l.b16 %v562
      %v1139 = vunpack.c.h.b16 %v562
      %v1140 = vunpack.c.l.b16 %v563
      %v1141 = vunpack.c.h.b16 %v563
      %v1142 = vunpack.c.l.b16 %v564
      %v1143 = vunpack.c.h.b16 %v564
      %v1144 = vunpack.c.l.b16 %v565
      %v1145 = vunpack.c.h.b16 %v565
      %v1146 = vunpack.c.l.b16 %v566
      %v1147 = vunpack.c.h.b16 %v566
      %v1148 = vunpack.c.l.b16 %v567
      %v1149 = vunpack.c.h.b16 %v567
      %v1150 = vunpack.c.l.b16 %v568
      %v1151 = vunpack.c.h.b16 %v568
      %v1152 = vunpack.c.l.b16 %v569
      %v1153 = vunpack.c.h.b16 %v569
      %v1154 = vunpack.c.l.b16 %v570
      %v1155 = vunpack.c.h.b16 %v570
      %v1156 = vunpack.c.l.b16 %v571
      %v1157 = vunpack.c.h.b16 %v571
      %v1158 = vunpack.c.l.b16 %v572
      %v1159 = vunpack.c.h.b16 %v572
      %v1160 = vunpack.c.l.b16 %v573
      %v1161 = vunpack.c.h.b16 %v573
      %v1162 = vunpack.c.l.b16 %v574
      %v1163 = vunpack.c.h.b16 %v574
      %v1164 = vunpack.c.l.b16 %v575
      %v1165 = vunpack.c.h.b16 %v575
      %v1166 = vunpack.c.l.b16 %v576
      %v1167 = vunpack.c.h.b16 %v576
      %v1168 = vunpack.c.l.b16 %v577
      %v1169 = vunpack.c.h.b16 %v577
      %v1170 = vunpack.c.l.b16 %v578
      %v1171 = vunpack.c.h.b16 %v578
      %v1172 = vunpack.c.l.b16 %v579
      %v1173 = vunpack.c.h.b16 %v579
      %v1174 = vunpack.c.l.b16 %v580
      %v1175 = vunpack.c.h.b16 %v580
      %v1176 = vunpack.c.l.b16 %v581
      %v1177 = vunpack.c.h.b16 %v581
      %v1178 = vunpack.c.l.b16 %v582
      %v1179 = vunpack.c.h.b16 %v582
      %v1180 = vunpack.c.l.b16 %v583
      %v1181 = vunpack.c.h.b16 %v583
      %v1182 = vunpack.c.l.b16 %v584
      %v1183 = vunpack.c.h.b16 %v584
      %v1184 = vunpack.c.l.b16 %v585
      %v1185 = vunpack.c.h.b16 %v585
      %v1186 = vunpack.c.l.b16 %v586
      %v1187 = vunpack.c.h.b16 %v586
      %v1188 = vunpack.c.l.b16 %v587
      %v1189 = vunpack.c.h.b16 %v587
      %v1190 = vunpack.c.l.b16 %v588
      %v1191 = vunpack.c.h.b16 %v588
      %v1192 = vunpack.c.l.b16 %v589
      %v1193 = vunpack.c.h.b16 %v589
      %v1194 = vunpack.c.l.b16 %v590
      %v1195 = vunpack.c.h.b16 %v590
      %v1196 = vunpack.c.l.b16 %v591
      %v1197 = vunpack.c.h.b16 %v591
      %v1198 = vunpack.c.l.b16 %v592
      %v1199 = vunpack.c.h.b16 %v592
      %v1200 = vunpack.c.l.b16 %v593
      %v1201 = vunpack.c.h.b16 %v593
      %v1202 = vunpack.c.l.b16 %v594
      %v1203 = vunpack.c.h.b16 %v594
      %v1204 = vunpack.c.l.b16 %v595
      %v1205 = vunpack.c.h.b16 %v595
      %v1206 = vpack.c.b16 %v818, %v814
      %v1207 = vpack.c.b16 %v819, %v815
      %v1208 = vpack.c.b16 %v820, %v816
      %v1209 = vpack.c.b16 %v821, %v817
      %v1210 = vpack.c.b16 %v826, %v822
      %v1211 = vpack.c.b16 %v827, %v823
      %v1212 = vpack.c.b16 %v828, %v824
      %v1213 = vpack.c.b16 %v829, %v825
      %v1214 = vpack.c.b16 %v834, %v830
      %v1215 = vpack.c.b16 %v835, %v831
      %v1216 = vpack.c.b16 %v836, %v832
      %v1217 = vpack.c.b16 %v837, %v833
      %v1218 = vpack.c.b16 %v842, %v838
      %v1219 = vpack.c.b16 %v843, %v839
      %v1220 = vpack.c.b16 %v844, %v840
      %v1221 = vpack.c.b16 %v845, %v841
      %v1222 = vpack.c.b16 %v850, %v846
      %v1223 = vpack.c.b16 %v851, %v847
      %v1224 = vpack.c.b16 %v852, %v848
      %v1225 = vpack.c.b16 %v853, %v849
      %v1226 = vpack.c.b16 %v858, %v854
      %v1227 = vpack.c.b16 %v859, %v855
      %v1228 = vpack.c.b16 %v860, %v856
      %v1229 = vpack.c.b16 %v861, %v857
      %v1230 = vpack.c.b16 %v866, %v862
      %v1231 = vpack.c.b16 %v867, %v863
      %v1232 = vpack.c.b16 %v868, %v864
      %v1233 = vpack.c.b16 %v869, %v865
      %v1234 = vpack.c.b16 %v874, %v870
      %v1235 = vpack.c.b16 %v875, %v871
      %v1236 = vpack.c.b16 %v876, %v872
      %v1237 = vpack.c.b16 %v877, %v873
      %v1238 = vpack.c.b16 %v882, %v878
      %v1239 = vpack.c.b16 %v883, %v879
      %v1240 = vpack.c.b16 %v884, %v880
      %v1241 = vpack.c.b16 %v885, %v881
      %v1242 = vpack.c.b16 %v890, %v886
      %v1243 = vpack.c.b16 %v891, %v887
      %v1244 = vpack.c.b16 %v892, %v888
      %v1245 = vpack.c.b16 %v893, %v889
      %v1246 = vpack.c.b16 %v898, %v894
      %v1247 = vpack.c.b16 %v899, %v895
      %v1248 = vpack.c.b16 %v900, %v896
      %v1249 = vpack.c.b16 %v901, %v897
      %v1250 = vpack.c.b16 %v906, %v902
      %v1251 = vpack.c.b16 %v907, %v903
      %v1252 = vpack.c.b16 %v908, %v904
      %v1253 = vpack.c.b16 %v909, %v905
      %v1254 = vpack.c.b16 %v914, %v910
      %v1255 = vpack.c.b16 %v915, %v911
      %v1256 = vpack.c.b16 %v916, %v912
      %v1257 = vpack.c.b16 %v917, %v913
      %v1258 = vpack.c.b16 %v922, %v918
      %v1259 = vpack.c.b16 %v923, %v919
      %v1260 = vpack.c.b16 %v924, %v920
      %v1261 = vpack.c.b16 %v925, %v921
      %v1262 = vpack.c.b16 %v930, %v926
      %v1263 = vpack.c.b16 %v931, %v927
      %v1264 = vpack.c.b16 %v932, %v928
      %v1265 = vpack.c.b16 %v933, %v929
      %v1266 = vpack.c.b16 %v938, %v934
      %v1267 = vpack.c.b16 %v939, %v935
      %v1268 = vpack.c.b16 %v940, %v936
      %v1269 = vpack.c.b16 %v941, %v937
      %v1270 = vpack.c.b16 %v946, %v942
      %v1271 = vpack.c.b16 %v947, %v943
      %v1272 = vpack.c.b16 %v948, %v944
      %v1273 = vpack.c.b16 %v949, %v945
      %v1274 = vpack.c.b16 %v954, %v950
      %v1275 = vpack.c.b16 %v955, %v951
      %v1276 = vpack.c.b16 %v956, %v952
      %v1277 = vpack.c.b16 %v957, %v953
      %v1278 = vpack.c.b16 %v962, %v958
      %v1279 = vpack.c.b16 %v963, %v959
      %v1280 = vpack.c.b16 %v964, %v960
      %v1281 = vpack.c.b16 %v965, %v961
      %v1282 = vpack.c.b16 %v970, %v966
      %v1283 = vpack.c.b16 %v971, %v967
      %v1284 = vpack.c.b16 %v972, %v968
      %v1285 = vpack.c.b16 %v973, %v969
      %v1286 = vpack.c.b16 %v978, %v974
      %v1287 = vpack.c.b16 %v979, %v975
      %v1288 = vpack.c.b16 %v980, %v976
      %v1289 = vpack.c.b16 %v981, %v977
      %v1290 = vpack.c.b16 %v986, %v982
      %v1291 = vpack.c.b16 %v987, %v983
      %v1292 = vpack.c.b16 %v988, %v984
      %v1293 = vpack.c.b16 %v989, %v985
      %v1294 = vpack.c.b16 %v994, %v990
      %v1295 = vpack.c.b16 %v995, %v991
      %v1296 = vpack.c.b16 %v996, %v992
      %v1297 = vpack.c.b16 %v997, %v993
      %v1298 = vpack.c.b16 %v1002, %v998
      %v1299 = vpack.c.b16 %v1003, %v999
      %v1300 = vpack.c.b16 %v1004, %v1000
      %v1301 = vpack.c.b16 %v1005, %v1001
      %v1302 = vpack.c.b16 %v1010, %v1006
      %v1303 = vpack.c.b16 %v1011, %v1007
      %v1304 = vpack.c.b16 %v1012, %v1008
      %v1305 = vpack.c.b16 %v1013, %v1009
      %v1306 = vpack.c.b16 %v1018, %v1014
      %v1307 = vpack.c.b16 %v1019, %v1015
      %v1308 = vpack.c.b16 %v1020, %v1016
      %v1309 = vpack.c.b16 %v1021, %v1017
      %v1310 = vpack.c.b16 %v1026, %v1022
      %v1311 = vpack.c.b16 %v1027, %v1023
      %v1312 = vpack.c.b16 %v1028, %v1024
      %v1313 = vpack.c.b16 %v1029, %v1025
      %v1314 = vpack.c.b16 %v1034, %v1030
      %v1315 = vpack.c.b16 %v1035, %v1031
      %v1316 = vpack.c.b16 %v1036, %v1032
      %v1317 = vpack.c.b16 %v1037, %v1033
      %v1318 = vpack.c.b16 %v1042, %v1038
      %v1319 = vpack.c.b16 %v1043, %v1039
      %v1320 = vpack.c.b16 %v1044, %v1040
      %v1321 = vpack.c.b16 %v1045, %v1041
      %v1322 = vpack.c.b16 %v1050, %v1046
      %v1323 = vpack.c.b16 %v1051, %v1047
      %v1324 = vpack.c.b16 %v1052, %v1048
      %v1325 = vpack.c.b16 %v1053, %v1049
      %v1326 = vpack.c.b16 %v1058, %v1054
      %v1327 = vpack.c.b16 %v1059, %v1055
      %v1328 = vpack.c.b16 %v1060, %v1056
      %v1329 = vpack.c.b16 %v1061, %v1057
      %v1330 = vpack.c.b16 %v1066, %v1062
      %v1331 = vpack.c.b16 %v1067, %v1063
      %v1332 = vpack.c.b16 %v1068, %v1064
      %v1333 = vpack.c.b16 %v1069, %v1065
      %v1334 = vpack.c.b16 %v1074, %v1070
      %v1335 = vpack.c.b16 %v1075, %v1071
      %v1336 = vpack.c.b16 %v1076, %v1072
      %v1337 = vpack.c.b16 %v1077, %v1073
      %v1338 = vpack.c.b16 %v1082, %v1078
      %v1339 = vpack.c.b16 %v1083, %v1079
      %v1340 = vpack.c.b16 %v1084, %v1080
      %v1341 = vpack.c.b16 %v1085, %v1081
      %v1342 = vpack.c.b16 %v1090, %v1086
      %v1343 = vpack.c.b16 %v1091, %v1087
      %v1344 = vpack.c.b16 %v1092, %v1088
      %v1345 = vpack.c.b16 %v1093, %v1089
      %v1346 = vpack.c.b16 %v1098, %v1094
      %v1347 = vpack.c.b16 %v1099, %v1095
      %v1348 = vpack.c.b16 %v1100, %v1096
      %v1349 = vpack.c.b16 %v1101, %v1097
      %v1350 = vpack.c.b16 %v1106, %v1102
      %v1351 = vpack.c.b16 %v1107, %v1103
      %v1352 = vpack.c.b16 %v1108, %v1104
      %v1353 = vpack.c.b16 %v1109, %v1105
      %v1354 = vpack.c.b16 %v1114, %v1110
      %v1355 = vpack.c.b16 %v1115, %v1111
      %v1356 = vpack.c.b16 %v1116, %v1112
      %v1357 = vpack.c.b16 %v1117, %v1113
      %v1358 = vpack.c.b16 %v1122, %v1118
      %v1359 = vpack.c.b16 %v1123, %v1119
      %v1360 = vpack.c.b16 %v1124, %v1120
      %v1361 = vpack.c.b16 %v1125, %v1121
      %v1362 = vpack.c.b16 %v1130, %v1126
      %v1363 = vpack.c.b16 %v1131, %v1127
      %v1364 = vpack.c.b16 %v1132, %v1128
      %v1365 = vpack.c.b16 %v1133, %v1129
      %v1366 = vpack.c.b16 %v1138, %v1134
      %v1367 = vpack.c.b16 %v1139, %v1135
      %v1368 = vpack.c.b16 %v1140, %v1136
      %v1369 = vpack.c.b16 %v1141, %v1137
      %v1370 = vpack.c.b16 %v1146, %v1142
      %v1371 = vpack.c.b16 %v1147, %v1143
      %v1372 = vpack.c.b16 %v1148, %v1144
      %v1373 = vpack.c.b16 %v1149, %v1145
      %v1374 = vpack.c.b16 %v1154, %v1150
      %v1375 = vpack.c.b16 %v1155, %v1151
      %v1376 = vpack.c.b16 %v1156, %v1152
      %v1377 = vpack.c.b16 %v1157, %v1153
      %v1378 = vpack.c.b16 %v1162, %v1158
      %v1379 = vpack.c.b16 %v1163, %v1159
      %v1380 = vpack.c.b16 %v1164, %v1160
      %v1381 = vpack.c.b16 %v1165, %v1161
      %v1382 = vpack.c.b16 %v1170, %v1166
      %v1383 = vpack.c.b16 %v1171, %v1167
      %v1384 = vpack.c.b16 %v1172, %v1168
      %v1385 = vpack.c.b16 %v1173, %v1169
      %v1386 = vpack.c.b16 %v1178, %v1174
      %v1387 = vpack.c.b16 %v1179, %v1175
      %v1388 = vpack.c.b16 %v1180, %v1176
      %v1389 = vpack.c.b16 %v1181, %v1177
      %v1390 = vpack.c.b16 %v1186, %v1182
      %v1391 = vpack.c.b16 %v1187, %v1183
      %v1392 = vpack.c.b16 %v1188, %v1184
      %v1393 = vpack.c.b16 %v1189, %v1185
      %v1394 = vpack.c.b16 %v1194, %v1190
      %v1395 = vpack.c.b16 %v1195, %v1191
      %v1396 = vpack.c.b16 %v1196, %v1192
      %v1397 = vpack.c.b16 %v1197, %v1193
      %v1398 = vpack.c.b16 %v1202, %v1198
      %v1399 = vpack.c.b16 %v1203, %v1199
      %v1400 = vpack.c.b16 %v1204, %v1200
      %v1401 = vpack.c.b16 %v1205, %v1201
      %vm1598 = vcmask 130048
      %v1600 = vsel %vm1598, %v399, 0
      %1602 = vmatprep.subr.bf16.mxu0 %v1235
      %1603 = vmatpush1.bf16.msra.mxu0 %v1234
      %1604 = vmatprep.subr.bf16.mxu0 %v1231
      %1605 = vmatpush1.bf16.msra.mxu0 %v1230
      %1606 = vmatprep.subr.bf16.mxu0 %v1227
      %1607 = vmatpush1.bf16.msra.mxu0 %v1226
      %1608 = vmatprep.subr.bf16.mxu0 %v1223
      %1609 = vmatpush1.bf16.msra.mxu0 %v1222
      %1610 = vmatprep.subr.bf16.mxu0 %v1219
      %1611 = vmatpush1.bf16.msra.mxu0 %v1218
      %1612 = vmatprep.subr.bf16.mxu0 %v1215
      %1613 = vmatpush1.bf16.msra.mxu0 %v1214
      %1614 = vmatprep.subr.bf16.mxu0 %v1211
      %1615 = vmatpush1.bf16.msra.mxu0 %v1210
      %1616 = vmatprep.subr.bf16.mxu0 %v1207
      %1617 = vmatpush1.bf16.msra.mxu0 %v1206
      %1618 = vmatprep.subr.bf16.mxu0 %v1267
      %1619 = vmatpush2.bf16.msra.mxu0 %v1266
      %1620 = vmatprep.subr.bf16.mxu0 %v1263
      %1621 = vmatpush2.bf16.msra.mxu0 %v1262
      %1622 = vmatprep.subr.bf16.mxu0 %v1259
      %1623 = vmatpush2.bf16.msra.mxu0 %v1258
      %1624 = vmatprep.subr.bf16.mxu0 %v1255
      %1625 = vmatpush2.bf16.msra.mxu0 %v1254
      %1626 = vmatprep.subr.bf16.mxu0 %v1251
      %1627 = vmatpush2.bf16.msra.mxu0 %v1250
      %1628 = vmatprep.subr.bf16.mxu0 %v1247
      %1629 = vmatpush2.bf16.msra.mxu0 %v1246
      %1630 = vmatprep.subr.bf16.mxu0 %v1243
      %1631 = vmatpush2.bf16.msra.mxu0 %v1242
      %1632 = vmatprep.subr.bf16.mxu0 %v1239
      %1633 = vmatpush2.bf16.msra.mxu0 %v1238
      %1634 = vmatprep.mubr.bf16.mxu0 %v394
      %1635 = vmatmul.mubr.bf16.gmra.mxu0 %v393
      %v1636 = vpop.f32.mrf.mxu0
      %v1637 = vadd.f32 %v601, %v1636
      %v1638 = vpop.f32.mrf.mxu0
      %v1639 = vadd.f32 %v605, %v1638
      %v1640 = vpop.f32.mrf.mxu0
      %v1641 = vpop.f32.mrf.mxu0
      %1642 = vdwg.mxu0
      %1643 = vmatprep.subr.bf16.mxu0 %v1299
      %1644 = vmatpush1.bf16.msra.mxu0 %v1298
      %1645 = vmatprep.subr.bf16.mxu0 %v1295
      %1646 = vmatpush1.bf16.msra.mxu0 %v1294
      %1647 = vmatprep.subr.bf16.mxu0 %v1291
      %1648 = vmatpush1.bf16.msra.mxu0 %v1290
      %1649 = vmatprep.subr.bf16.mxu0 %v1287
      %1650 = vmatpush1.bf16.msra.mxu0 %v1286
      %1651 = vmatprep.subr.bf16.mxu0 %v1283
      %1652 = vmatpush1.bf16.msra.mxu0 %v1282
      %1653 = vmatprep.subr.bf16.mxu0 %v1279
      %1654 = vmatpush1.bf16.msra.mxu0 %v1278
      %1655 = vmatprep.subr.bf16.mxu0 %v1275
      %1656 = vmatpush1.bf16.msra.mxu0 %v1274
      %1657 = vmatprep.subr.bf16.mxu0 %v1271
      %1658 = vmatpush1.bf16.msra.mxu0 %v1270
      %1659 = vmatprep.subr.bf16.mxu0 %v1331
      %1660 = vmatpush2.bf16.msra.mxu0 %v1330
      %1661 = vmatprep.subr.bf16.mxu0 %v1327
      %1662 = vmatpush2.bf16.msra.mxu0 %v1326
      %1663 = vmatprep.subr.bf16.mxu0 %v1323
      %1664 = vmatpush2.bf16.msra.mxu0 %v1322
      %1665 = vmatprep.subr.bf16.mxu0 %v1319
      %1666 = vmatpush2.bf16.msra.mxu0 %v1318
      %1667 = vmatprep.subr.bf16.mxu0 %v1315
      %1668 = vmatpush2.bf16.msra.mxu0 %v1314
      %1669 = vmatprep.subr.bf16.mxu0 %v1311
      %1670 = vmatpush2.bf16.msra.mxu0 %v1310
      %1671 = vmatprep.subr.bf16.mxu0 %v1307
      %1672 = vmatpush2.bf16.msra.mxu0 %v1306
      %1673 = vmatprep.subr.bf16.mxu0 %v1303
      %1674 = vmatpush2.bf16.msra.mxu0 %v1302
      %1675 = vmatprep.mubr.bf16.mxu0 %v396
      %1676 = vmatmul.mubr.bf16.gmra.mxu0 %v395
      %v1677 = vpop.f32.mrf.mxu0
      %v1678 = vadd.f32 %v1637, %v1677
      %v1679 = vpop.f32.mrf.mxu0
      %v1680 = vadd.f32 %v1639, %v1679
      %v1681 = vpop.f32.mrf.mxu0
      %v1682 = vpop.f32.mrf.mxu0
      %1683 = vdwg.mxu0
      %1684 = vmatprep.subr.bf16.mxu0 %v1363
      %1685 = vmatpush1.bf16.msra.mxu0 %v1362
      %1686 = vmatprep.subr.bf16.mxu0 %v1359
      %1687 = vmatpush1.bf16.msra.mxu0 %v1358
      %1688 = vmatprep.subr.bf16.mxu0 %v1355
      %1689 = vmatpush1.bf16.msra.mxu0 %v1354
      %1690 = vmatprep.subr.bf16.mxu0 %v1351
      %1691 = vmatpush1.bf16.msra.mxu0 %v1350
      %1692 = vmatprep.subr.bf16.mxu0 %v1347
      %1693 = vmatpush1.bf16.msra.mxu0 %v1346
      %1694 = vmatprep.subr.bf16.mxu0 %v1343
      %1695 = vmatpush1.bf16.msra.mxu0 %v1342
      %1696 = vmatprep.subr.bf16.mxu0 %v1339
      %1697 = vmatpush1.bf16.msra.mxu0 %v1338
      %1698 = vmatprep.subr.bf16.mxu0 %v1335
      %1699 = vmatpush1.bf16.msra.mxu0 %v1334
      %1700 = vmatprep.subr.bf16.mxu0 %v1395
      %1701 = vmatpush2.bf16.msra.mxu0 %v1394
      %1702 = vmatprep.subr.bf16.mxu0 %v1391
      %1703 = vmatpush2.bf16.msra.mxu0 %v1390
      %1704 = vmatprep.subr.bf16.mxu0 %v1387
      %1705 = vmatpush2.bf16.msra.mxu0 %v1386
      %1706 = vmatprep.subr.bf16.mxu0 %v1383
      %1707 = vmatpush2.bf16.msra.mxu0 %v1382
      %1708 = vmatprep.subr.bf16.mxu0 %v1379
      %1709 = vmatpush2.bf16.msra.mxu0 %v1378
      %1710 = vmatprep.subr.bf16.mxu0 %v1375
      %1711 = vmatpush2.bf16.msra.mxu0 %v1374
      %1712 = vmatprep.subr.bf16.mxu0 %v1371
      %1713 = vmatpush2.bf16.msra.mxu0 %v1370
      %1714 = vmatprep.subr.bf16.mxu0 %v1367
      %1715 = vmatpush2.bf16.msra.mxu0 %v1366
      %1716 = vmatprep.mubr.bf16.mxu0 %v398
      %1717 = vmatmul.mubr.bf16.gmra.mxu0 %v397
      %v1718 = vpop.f32.mrf.mxu0
      %v1719 = vadd.f32 %v1678, %v1718
      %v1720 = vpop.f32.mrf.mxu0
      %v1721 = vadd.f32 %v1680, %v1720
      %v1722 = vpop.f32.mrf.mxu0
      %v1723 = vpop.f32.mrf.mxu0
      %1724 = vdwg.mxu0
      %1725 = vmatprep.subr.bf16.mxu0 0
      %1726 = vmatpush1.bf16.msra.mxu0 0
      %1727 = vmatprep.subr.bf16.mxu0 0
      %1728 = vmatpush1.bf16.msra.mxu0 0
      %1729 = vmatprep.subr.bf16.mxu0 0
      %1730 = vmatpush1.bf16.msra.mxu0 0
      %1731 = vmatprep.subr.bf16.mxu0 0
      %1732 = vmatpush1.bf16.msra.mxu0 0
      %1733 = vmatprep.subr.bf16.mxu0 0
      %1734 = vmatpush1.bf16.msra.mxu0 0
      %1735 = vmatprep.subr.bf16.mxu0 0
      %1736 = vmatpush1.bf16.msra.mxu0 0
      %1737 = vmatprep.subr.bf16.mxu0 0
      %1738 = vmatpush1.bf16.msra.mxu0 0
      %1739 = vmatprep.subr.bf16.mxu0 %v1399
      %1740 = vmatpush1.bf16.msra.mxu0 %v1398
      %1741 = vmatprep.subr.bf16.mxu0 0
      %1742 = vmatpush2.bf16.msra.mxu0 0
      %1743 = vmatprep.subr.bf16.mxu0 0
      %1744 = vmatpush2.bf16.msra.mxu0 0
      %1745 = vmatprep.subr.bf16.mxu0 0
      %1746 = vmatpush2.bf16.msra.mxu0 0
      %1747 = vmatprep.subr.bf16.mxu0 0
      %1748 = vmatpush2.bf16.msra.mxu0 0
      %1749 = vmatprep.subr.bf16.mxu0 0
      %1750 = vmatpush2.bf16.msra.mxu0 0
      %1751 = vmatprep.subr.bf16.mxu0 0
      %1752 = vmatpush2.bf16.msra.mxu0 0
      %1753 = vmatprep.subr.bf16.mxu0 0
      %1754 = vmatpush2.bf16.msra.mxu0 0
      %1755 = vmatprep.subr.bf16.mxu0 0
      %1756 = vmatpush2.bf16.msra.mxu0 0
      %1757 = vmatprep.mubr.bf16.mxu0 0
      %1758 = vmatmul.mubr.bf16.gmra.mxu0 %v1600
      %v1759 = vpop.f32.mrf.mxu0
      %v1760 = vadd.f32 %v1719, %v1759
      %v1761 = vpop.f32.mrf.mxu0
      %v1762 = vadd.f32 %v1721, %v1761
      %v1763 = vpop.f32.mrf.mxu0
      %v1764 = vpop.f32.mrf.mxu0
      %1765 = vdwg.mxu0
      %1766 = vmatprep.subr.bf16.mxu0 %v1237
      %1767 = vmatpush1.bf16.msra.mxu0 %v1236
      %1768 = vmatprep.subr.bf16.mxu0 %v1233
      %1769 = vmatpush1.bf16.msra.mxu0 %v1232
      %1770 = vmatprep.subr.bf16.mxu0 %v1229
      %1771 = vmatpush1.bf16.msra.mxu0 %v1228
      %1772 = vmatprep.subr.bf16.mxu0 %v1225
      %1773 = vmatpush1.bf16.msra.mxu0 %v1224
      %1774 = vmatprep.subr.bf16.mxu0 %v1221
      %1775 = vmatpush1.bf16.msra.mxu0 %v1220
      %1776 = vmatprep.subr.bf16.mxu0 %v1217
      %1777 = vmatpush1.bf16.msra.mxu0 %v1216
      %1778 = vmatprep.subr.bf16.mxu0 %v1213
      %1779 = vmatpush1.bf16.msra.mxu0 %v1212
      %1780 = vmatprep.subr.bf16.mxu0 %v1209
      %1781 = vmatpush1.bf16.msra.mxu0 %v1208
      %1782 = vmatprep.subr.bf16.mxu0 %v1269
      %1783 = vmatpush2.bf16.msra.mxu0 %v1268
      %1784 = vmatprep.subr.bf16.mxu0 %v1265
      %1785 = vmatpush2.bf16.msra.mxu0 %v1264
      %1786 = vmatprep.subr.bf16.mxu0 %v1261
      %1787 = vmatpush2.bf16.msra.mxu0 %v1260
      %1788 = vmatprep.subr.bf16.mxu0 %v1257
      %1789 = vmatpush2.bf16.msra.mxu0 %v1256
      %1790 = vmatprep.subr.bf16.mxu0 %v1253
      %1791 = vmatpush2.bf16.msra.mxu0 %v1252
      %1792 = vmatprep.subr.bf16.mxu0 %v1249
      %1793 = vmatpush2.bf16.msra.mxu0 %v1248
      %1794 = vmatprep.subr.bf16.mxu0 %v1245
      %1795 = vmatpush2.bf16.msra.mxu0 %v1244
      %1796 = vmatprep.subr.bf16.mxu0 %v1241
      %1797 = vmatpush2.bf16.msra.mxu0 %v1240
      %1798 = vmatprep.mubr.bf16.mxu0 %v394
      %1799 = vmatmul.mubr.bf16.gmra.mxu0 %v393
      %v1800 = vpop.f32.mrf.mxu0
      %v1801 = vadd.f32 %v609, %v1800
      %v1802 = vpop.f32.mrf.mxu0
      %v1803 = vadd.f32 %v613, %v1802
      %v1804 = vpop.f32.mrf.mxu0
      %v1805 = vpop.f32.mrf.mxu0
      %1806 = vdwg.mxu0
      %1807 = vmatprep.subr.bf16.mxu0 %v1301
      %1808 = vmatpush1.bf16.msra.mxu0 %v1300
      %1809 = vmatprep.subr.bf16.mxu0 %v1297
      %1810 = vmatpush1.bf16.msra.mxu0 %v1296
      %1811 = vmatprep.subr.bf16.mxu0 %v1293
      %1812 = vmatpush1.bf16.msra.mxu0 %v1292
      %1813 = vmatprep.subr.bf16.mxu0 %v1289
      %1814 = vmatpush1.bf16.msra.mxu0 %v1288
      %1815 = vmatprep.subr.bf16.mxu0 %v1285
      %1816 = vmatpush1.bf16.msra.mxu0 %v1284
      %1817 = vmatprep.subr.bf16.mxu0 %v1281
      %1818 = vmatpush1.bf16.msra.mxu0 %v1280
      %1819 = vmatprep.subr.bf16.mxu0 %v1277
      %1820 = vmatpush1.bf16.msra.mxu0 %v1276
      %1821 = vmatprep.subr.bf16.mxu0 %v1273
      %1822 = vmatpush1.bf16.msra.mxu0 %v1272
      %1823 = vmatprep.subr.bf16.mxu0 %v1333
      %1824 = vmatpush2.bf16.msra.mxu0 %v1332
      %1825 = vmatprep.subr.bf16.mxu0 %v1329
      %1826 = vmatpush2.bf16.msra.mxu0 %v1328
      %1827 = vmatprep.subr.bf16.mxu0 %v1325
      %1828 = vmatpush2.bf16.msra.mxu0 %v1324
      %1829 = vmatprep.subr.bf16.mxu0 %v1321
      %1830 = vmatpush2.bf16.msra.mxu0 %v1320
      %1831 = vmatprep.subr.bf16.mxu0 %v1317
      %1832 = vmatpush2.bf16.msra.mxu0 %v1316
      %1833 = vmatprep.subr.bf16.mxu0 %v1313
      %1834 = vmatpush2.bf16.msra.mxu0 %v1312
      %1835 = vmatprep.subr.bf16.mxu0 %v1309
      %1836 = vmatpush2.bf16.msra.mxu0 %v1308
      %1837 = vmatprep.subr.bf16.mxu0 %v1305
      %1838 = vmatpush2.bf16.msra.mxu0 %v1304
      %1839 = vmatprep.mubr.bf16.mxu0 %v396
      %1840 = vmatmul.mubr.bf16.gmra.mxu0 %v395
      %v1841 = vpop.f32.mrf.mxu0
      %v1842 = vadd.f32 %v1801, %v1841
      %v1843 = vpop.f32.mrf.mxu0
      %v1844 = vadd.f32 %v1803, %v1843
      %v1845 = vpop.f32.mrf.mxu0
      %v1846 = vpop.f32.mrf.mxu0
      %1847 = vdwg.mxu0
      %1848 = vmatprep.subr.bf16.mxu0 %v1365
      %1849 = vmatpush1.bf16.msra.mxu0 %v1364
      %1850 = vmatprep.subr.bf16.mxu0 %v1361
      %1851 = vmatpush1.bf16.msra.mxu0 %v1360
      %1852 = vmatprep.subr.bf16.mxu0 %v1357
      %1853 = vmatpush1.bf16.msra.mxu0 %v1356
      %1854 = vmatprep.subr.bf16.mxu0 %v1353
      %1855 = vmatpush1.bf16.msra.mxu0 %v1352
      %1856 = vmatprep.subr.bf16.mxu0 %v1349
      %1857 = vmatpush1.bf16.msra.mxu0 %v1348
      %1858 = vmatprep.subr.bf16.mxu0 %v1345
      %1859 = vmatpush1.bf16.msra.mxu0 %v1344
      %1860 = vmatprep.subr.bf16.mxu0 %v1341
      %1861 = vmatpush1.bf16.msra.mxu0 %v1340
      %1862 = vmatprep.subr.bf16.mxu0 %v1337
      %1863 = vmatpush1.bf16.msra.mxu0 %v1336
      %1864 = vmatprep.subr.bf16.mxu0 %v1397
      %1865 = vmatpush2.bf16.msra.mxu0 %v1396
      %1866 = vmatprep.subr.bf16.mxu0 %v1393
      %1867 = vmatpush2.bf16.msra.mxu0 %v1392
      %1868 = vmatprep.subr.bf16.mxu0 %v1389
      %1869 = vmatpush2.bf16.msra.mxu0 %v1388
      %1870 = vmatprep.subr.bf16.mxu0 %v1385
      %1871 = vmatpush2.bf16.msra.mxu0 %v1384
      %1872 = vmatprep.subr.bf16.mxu0 %v1381
      %1873 = vmatpush2.bf16.msra.mxu0 %v1380
      %1874 = vmatprep.subr.bf16.mxu0 %v1377
      %1875 = vmatpush2.bf16.msra.mxu0 %v1376
      %1876 = vmatprep.subr.bf16.mxu0 %v1373
      %1877 = vmatpush2.bf16.msra.mxu0 %v1372
      %1878 = vmatprep.subr.bf16.mxu0 %v1369
      %1879 = vmatpush2.bf16.msra.mxu0 %v1368
      %1880 = vmatprep.mubr.bf16.mxu0 %v398
      %1881 = vmatmul.mubr.bf16.gmra.mxu0 %v397
      %v1882 = vpop.f32.mrf.mxu0
      %v1883 = vadd.f32 %v1842, %v1882
      %v1884 = vpop.f32.mrf.mxu0
      %v1885 = vadd.f32 %v1844, %v1884
      %v1886 = vpop.f32.mrf.mxu0
      %v1887 = vpop.f32.mrf.mxu0
      %1888 = vdwg.mxu0
      %1889 = vmatprep.subr.bf16.mxu0 0
      %1890 = vmatpush1.bf16.msra.mxu0 0
      %1891 = vmatprep.subr.bf16.mxu0 0
      %1892 = vmatpush1.bf16.msra.mxu0 0
      %1893 = vmatprep.subr.bf16.mxu0 0
      %1894 = vmatpush1.bf16.msra.mxu0 0
      %1895 = vmatprep.subr.bf16.mxu0 0
      %1896 = vmatpush1.bf16.msra.mxu0 0
      %1897 = vmatprep.subr.bf16.mxu0 0
      %1898 = vmatpush1.bf16.msra.mxu0 0
      %1899 = vmatprep.subr.bf16.mxu0 0
      %1900 = vmatpush1.bf16.msra.mxu0 0
      %1901 = vmatprep.subr.bf16.mxu0 0
      %1902 = vmatpush1.bf16.msra.mxu0 0
      %1903 = vmatprep.subr.bf16.mxu0 %v1401
      %1904 = vmatpush1.bf16.msra.mxu0 %v1400
      %1905 = vmatprep.subr.bf16.mxu0 0
      %1906 = vmatpush2.bf16.msra.mxu0 0
      %1907 = vmatprep.subr.bf16.mxu0 0
      %1908 = vmatpush2.bf16.msra.mxu0 0
      %1909 = vmatprep.subr.bf16.mxu0 0
      %1910 = vmatpush2.bf16.msra.mxu0 0
      %1911 = vmatprep.subr.bf16.mxu0 0
      %1912 = vmatpush2.bf16.msra.mxu0 0
      %1913 = vmatprep.subr.bf16.mxu0 0
      %1914 = vmatpush2.bf16.msra.mxu0 0
      %1915 = vmatprep.subr.bf16.mxu0 0
      %1916 = vmatpush2.bf16.msra.mxu0 0
      %1917 = vmatprep.subr.bf16.mxu0 0
      %1918 = vmatpush2.bf16.msra.mxu0 0
      %1919 = vmatprep.subr.bf16.mxu0 0
      %1920 = vmatpush2.bf16.msra.mxu0 0
      %1921 = vmatprep.mubr.bf16.mxu0 0
      %1922 = vmatmul.mubr.bf16.gmra.mxu0 %v1600
      %v1923 = vpop.f32.mrf.mxu0
      %v1924 = vadd.f32 %v1883, %v1923
      %v1925 = vpop.f32.mrf.mxu0
      %v1926 = vadd.f32 %v1885, %v1925
      %v1927 = vpop.f32.mrf.mxu0
      %v1928 = vpop.f32.mrf.mxu0
      %1929 = vdwg.mxu0
      %v1930 = vmax.f32 %v1760, 0.0
      %v1931 = vmax.f32 %v1762, 0.0
      %v1932 = vmax.f32 %v1924, 0.0
      %v1933 = vmax.f32 %v1926, 0.0
      %v1934 = vpack.c.bf16 %v1930, %v1930
      %v1935 = vpack.c.bf16 %v1931, %v1931
      %v1936 = vpack.c.bf16 %v1932, %v1932
      %v1937 = vpack.c.bf16 %v1933, %v1933
      %v1938 = vld [vmem:[%s3] sm:$0xff]
      %v1939 = vld [vmem:[%s3 + $0x8] sm:$0xff]
      %v1940 = vld [vmem:[%s3 + $0x10] sm:$0xff]
      %v1941 = vld [vmem:[%s3 + $0x18] sm:$0xff]
      %v1942 = vld [vmem:[%s3 + $0x20] sm:$0xff]
      %v1943 = vld [vmem:[%s3 + $0x28] sm:$0xff]
      %v1944 = vld [vmem:[%s3 + $0x30] sm:$0xff]
      %v1945 = vld [vmem:[%s3 + $0x38] sm:$0xff]
      %v1946 = vld [vmem:[%s3 + $0x40] sm:$0xff]
      %v1947 = vld [vmem:[%s3 + $0x48] sm:$0xff]
      %v1948 = vld [vmem:[%s3 + $0x50] sm:$0xff]
      %v1949 = vld [vmem:[%s3 + $0x58] sm:$0xff]
      %v1950 = vld [vmem:[%s3 + $0x60] sm:$0xff]
      %v1951 = vld [vmem:[%s3 + $0x68] sm:$0xff]
      %v1952 = vld [vmem:[%s3 + $0x70] sm:$0xff]
      %v1953 = vld [vmem:[%s3 + $0x78] sm:$0xff]
      %v1954 = vld [vmem:[%s3 + $0x80] sm:$0xff]
      %v1955 = vld [vmem:[%s3 + $0x88] sm:$0xff]
      %v1956 = vld [vmem:[%s3 + $0x90] sm:$0xff]
      %v1957 = vld [vmem:[%s3 + $0x98] sm:$0xff]
      %v1958 = vld [vmem:[%s3 + $0xa0] sm:$0xff]
      %v1959 = vld [vmem:[%s3 + $0xa8] sm:$0xff]
      %v1960 = vld [vmem:[%s3 + $0xb0] sm:$0xff]
      %v1961 = vld [vmem:[%s3 + $0xb8] sm:$0xff]
      %v1962 = vld [vmem:[%s3 + $0xc0] sm:$0xff]
      %v1963 = vld [vmem:[%s3 + $0xc8] sm:$0xff]
      %v1964 = vld [vmem:[%s3 + $0xd0] sm:$0xff]
      %v1965 = vld [vmem:[%s3 + $0xd8] sm:$0xff]
      %v1966 = vld [vmem:[%s3 + $0xe0] sm:$0xff]
      %v1967 = vld [vmem:[%s3 + $0xe8] sm:$0xff]
      %v1968 = vld [vmem:[%s3 + $0xf0] sm:$0xff]
      %v1969 = vld [vmem:[%s3 + $0xf8] sm:$0xff]
      %v1970 = vld [vmem:[%s3 + $0x100] sm:$0xff]
      %v1971 = vld [vmem:[%s3 + $0x108] sm:$0xff]
      %v1972 = vld [vmem:[%s3 + $0x110] sm:$0xff]
      %v1973 = vld [vmem:[%s3 + $0x118] sm:$0xff]
      %v1974 = vld [vmem:[%s3 + $0x120] sm:$0xff]
      %v1975 = vld [vmem:[%s3 + $0x128] sm:$0xff]
      %v1976 = vld [vmem:[%s3 + $0x130] sm:$0xff]
      %v1977 = vld [vmem:[%s3 + $0x138] sm:$0xff]
      %v1978 = vld [vmem:[%s3 + $0x140] sm:$0xff]
      %v1979 = vld [vmem:[%s3 + $0x148] sm:$0xff]
      %v1980 = vld [vmem:[%s3 + $0x150] sm:$0xff]
      %v1981 = vld [vmem:[%s3 + $0x158] sm:$0xff]
      %v1982 = vld [vmem:[%s3 + $0x160] sm:$0xff]
      %v1983 = vld [vmem:[%s3 + $0x168] sm:$0xff]
      %v1984 = vld [vmem:[%s3 + $0x170] sm:$0xff]
      %v1985 = vld [vmem:[%s3 + $0x178] sm:$0xff]
      %v1986 = vld [vmem:[%s3 + $0x180] sm:$0xff]
      %v1987 = vld [vmem:[%s3 + $0x188] sm:$0xff]
      %v1988 = vld [vmem:[%s3 + $0x190] sm:$0xff]
      %v1989 = vld [vmem:[%s3 + $0x198] sm:$0xff]
      %v1990 = vld [vmem:[%s3 + $0x1a0] sm:$0xff]
      %v1991 = vld [vmem:[%s3 + $0x1a8] sm:$0xff]
      %v1992 = vld [vmem:[%s3 + $0x1b0] sm:$0xff]
      %v1993 = vld [vmem:[%s3 + $0x1b8] sm:$0xff]
      %v1994 = vld [vmem:[%s3 + $0x1c0] sm:$0xff]
      %v1995 = vld [vmem:[%s3 + $0x1c8] sm:$0xff]
      %v1996 = vld [vmem:[%s3 + $0x1d0] sm:$0xff]
      %v1997 = vld [vmem:[%s3 + $0x1d8] sm:$0xff]
      %v1998 = vld [vmem:[%s3 + $0x1e0] sm:$0xff]
      %v1999 = vld [vmem:[%s3 + $0x1e8] sm:$0xff]
      %v2000 = vld [vmem:[%s3 + $0x1f0] sm:$0xff]
      %v2001 = vld [vmem:[%s3 + $0x1f8] sm:$0xff]
      %v2002 = vld [vmem:[%s4] sm:$0x3]
      %v2004 = vlaneseq
      %v2005 = vshrl.u32 %v2004, 7
      %v2006 = vsub.s32 0, %v2005
      %v2007 = vrot.slane %v2002, %v2006
      %v2008 = vlaneseq
      %v2009 = vshrl.u32 %v2008, 7
      %v2010 = vsub.s32 1, %v2009
      %v2011 = vrot.slane %v2002, %v2010
      %v2078 = vunpack.c.l.b16 %v1938
      %v2079 = vunpack.c.h.b16 %v1938
      %v2080 = vunpack.c.l.b16 %v1939
      %v2081 = vunpack.c.h.b16 %v1939
      %v2082 = vunpack.c.l.b16 %v1940
      %v2083 = vunpack.c.h.b16 %v1940
      %v2084 = vunpack.c.l.b16 %v1941
      %v2085 = vunpack.c.h.b16 %v1941
      %v2086 = vunpack.c.l.b16 %v1942
      %v2087 = vunpack.c.h.b16 %v1942
      %v2088 = vunpack.c.l.b16 %v1943
      %v2089 = vunpack.c.h.b16 %v1943
      %v2090 = vunpack.c.l.b16 %v1944
      %v2091 = vunpack.c.h.b16 %v1944
      %v2092 = vunpack.c.l.b16 %v1945
      %v2093 = vunpack.c.h.b16 %v1945
      %v2094 = vunpack.c.l.b16 %v1946
      %v2095 = vunpack.c.h.b16 %v1946
      %v2096 = vunpack.c.l.b16 %v1947
      %v2097 = vunpack.c.h.b16 %v1947
      %v2098 = vunpack.c.l.b16 %v1948
      %v2099 = vunpack.c.h.b16 %v1948
      %v2100 = vunpack.c.l.b16 %v1949
      %v2101 = vunpack.c.h.b16 %v1949
      %v2102 = vunpack.c.l.b16 %v1950
      %v2103 = vunpack.c.h.b16 %v1950
      %v2104 = vunpack.c.l.b16 %v1951
      %v2105 = vunpack.c.h.b16 %v1951
      %v2106 = vunpack.c.l.b16 %v1952
      %v2107 = vunpack.c.h.b16 %v1952
      %v2108 = vunpack.c.l.b16 %v1953
      %v2109 = vunpack.c.h.b16 %v1953
      %v2110 = vunpack.c.l.b16 %v1954
      %v2111 = vunpack.c.h.b16 %v1954
      %v2112 = vunpack.c.l.b16 %v1955
      %v2113 = vunpack.c.h.b16 %v1955
      %v2114 = vunpack.c.l.b16 %v1956
      %v2115 = vunpack.c.h.b16 %v1956
      %v2116 = vunpack.c.l.b16 %v1957
      %v2117 = vunpack.c.h.b16 %v1957
      %v2118 = vunpack.c.l.b16 %v1958
      %v2119 = vunpack.c.h.b16 %v1958
      %v2120 = vunpack.c.l.b16 %v1959
      %v2121 = vunpack.c.h.b16 %v1959
      %v2122 = vunpack.c.l.b16 %v1960
      %v2123 = vunpack.c.h.b16 %v1960
      %v2124 = vunpack.c.l.b16 %v1961
      %v2125 = vunpack.c.h.b16 %v1961
      %v2126 = vunpack.c.l.b16 %v1962
      %v2127 = vunpack.c.h.b16 %v1962
      %v2128 = vunpack.c.l.b16 %v1963
      %v2129 = vunpack.c.h.b16 %v1963
      %v2130 = vunpack.c.l.b16 %v1964
      %v2131 = vunpack.c.h.b16 %v1964
      %v2132 = vunpack.c.l.b16 %v1965
      %v2133 = vunpack.c.h.b16 %v1965
      %v2134 = vunpack.c.l.b16 %v1966
      %v2135 = vunpack.c.h.b16 %v1966
      %v2136 = vunpack.c.l.b16 %v1967
      %v2137 = vunpack.c.h.b16 %v1967
      %v2138 = vunpack.c.l.b16 %v1968
      %v2139 = vunpack.c.h.b16 %v1968
      %v2140 = vunpack.c.l.b16 %v1969
      %v2141 = vunpack.c.h.b16 %v1969
      %v2142 = vunpack.c.l.b16 %v1970
      %v2143 = vunpack.c.h.b16 %v1970
      %v2144 = vunpack.c.l.b16 %v1971
      %v2145 = vunpack.c.h.b16 %v1971
      %v2146 = vunpack.c.l.b16 %v1972
      %v2147 = vunpack.c.h.b16 %v1972
      %v2148 = vunpack.c.l.b16 %v1973
      %v2149 = vunpack.c.h.b16 %v1973
      %v2150 = vunpack.c.l.b16 %v1974
      %v2151 = vunpack.c.h.b16 %v1974
      %v2152 = vunpack.c.l.b16 %v1975
      %v2153 = vunpack.c.h.b16 %v1975
      %v2154 = vunpack.c.l.b16 %v1976
      %v2155 = vunpack.c.h.b16 %v1976
      %v2156 = vunpack.c.l.b16 %v1977
      %v2157 = vunpack.c.h.b16 %v1977
      %v2158 = vunpack.c.l.b16 %v1978
      %v2159 = vunpack.c.h.b16 %v1978
      %v2160 = vunpack.c.l.b16 %v1979
      %v2161 = vunpack.c.h.b16 %v1979
      %v2162 = vunpack.c.l.b16 %v1980
      %v2163 = vunpack.c.h.b16 %v1980
      %v2164 = vunpack.c.l.b16 %v1981
      %v2165 = vunpack.c.h.b16 %v1981
      %v2166 = vunpack.c.l.b16 %v1982
      %v2167 = vunpack.c.h.b16 %v1982
      %v2168 = vunpack.c.l.b16 %v1983
      %v2169 = vunpack.c.h.b16 %v1983
      %v2170 = vunpack.c.l.b16 %v1984
      %v2171 = vunpack.c.h.b16 %v1984
      %v2172 = vunpack.c.l.b16 %v1985
      %v2173 = vunpack.c.h.b16 %v1985
      %v2174 = vunpack.c.l.b16 %v1986
      %v2175 = vunpack.c.h.b16 %v1986
      %v2176 = vunpack.c.l.b16 %v1987
      %v2177 = vunpack.c.h.b16 %v1987
      %v2178 = vunpack.c.l.b16 %v1988
      %v2179 = vunpack.c.h.b16 %v1988
      %v2180 = vunpack.c.l.b16 %v1989
      %v2181 = vunpack.c.h.b16 %v1989
      %v2182 = vunpack.c.l.b16 %v1990
      %v2183 = vunpack.c.h.b16 %v1990
      %v2184 = vunpack.c.l.b16 %v1991
      %v2185 = vunpack.c.h.b16 %v1991
      %v2186 = vunpack.c.l.b16 %v1992
      %v2187 = vunpack.c.h.b16 %v1992
      %v2188 = vunpack.c.l.b16 %v1993
      %v2189 = vunpack.c.h.b16 %v1993
      %v2190 = vunpack.c.l.b16 %v1994
      %v2191 = vunpack.c.h.b16 %v1994
      %v2192 = vunpack.c.l.b16 %v1995
      %v2193 = vunpack.c.h.b16 %v1995
      %v2194 = vunpack.c.l.b16 %v1996
      %v2195 = vunpack.c.h.b16 %v1996
      %v2196 = vunpack.c.l.b16 %v1997
      %v2197 = vunpack.c.h.b16 %v1997
      %v2198 = vunpack.c.l.b16 %v1998
      %v2199 = vunpack.c.h.b16 %v1998
      %v2200 = vunpack.c.l.b16 %v1999
      %v2201 = vunpack.c.h.b16 %v1999
      %v2202 = vunpack.c.l.b16 %v2000
      %v2203 = vunpack.c.h.b16 %v2000
      %v2204 = vunpack.c.l.b16 %v2001
      %v2205 = vunpack.c.h.b16 %v2001
      %v2206 = vpack.c.b16 %v2080, %v2078
      %v2207 = vpack.c.b16 %v2081, %v2079
      %v2208 = vpack.c.b16 %v2084, %v2082
      %v2209 = vpack.c.b16 %v2085, %v2083
      %v2210 = vpack.c.b16 %v2088, %v2086
      %v2211 = vpack.c.b16 %v2089, %v2087
      %v2212 = vpack.c.b16 %v2092, %v2090
      %v2213 = vpack.c.b16 %v2093, %v2091
      %v2214 = vpack.c.b16 %v2096, %v2094
      %v2215 = vpack.c.b16 %v2097, %v2095
      %v2216 = vpack.c.b16 %v2100, %v2098
      %v2217 = vpack.c.b16 %v2101, %v2099
      %v2218 = vpack.c.b16 %v2104, %v2102
      %v2219 = vpack.c.b16 %v2105, %v2103
      %v2220 = vpack.c.b16 %v2108, %v2106
      %v2221 = vpack.c.b16 %v2109, %v2107
      %v2222 = vpack.c.b16 %v2112, %v2110
      %v2223 = vpack.c.b16 %v2113, %v2111
      %v2224 = vpack.c.b16 %v2116, %v2114
      %v2225 = vpack.c.b16 %v2117, %v2115
      %v2226 = vpack.c.b16 %v2120, %v2118
      %v2227 = vpack.c.b16 %v2121, %v2119
      %v2228 = vpack.c.b16 %v2124, %v2122
      %v2229 = vpack.c.b16 %v2125, %v2123
      %v2230 = vpack.c.b16 %v2128, %v2126
      %v2231 = vpack.c.b16 %v2129, %v2127
      %v2232 = vpack.c.b16 %v2132, %v2130
      %v2233 = vpack.c.b16 %v2133, %v2131
      %v2234 = vpack.c.b16 %v2136, %v2134
      %v2235 = vpack.c.b16 %v2137, %v2135
      %v2236 = vpack.c.b16 %v2140, %v2138
      %v2237 = vpack.c.b16 %v2141, %v2139
      %v2238 = vpack.c.b16 %v2144, %v2142
      %v2239 = vpack.c.b16 %v2145, %v2143
      %v2240 = vpack.c.b16 %v2148, %v2146
      %v2241 = vpack.c.b16 %v2149, %v2147
      %v2242 = vpack.c.b16 %v2152, %v2150
      %v2243 = vpack.c.b16 %v2153, %v2151
      %v2244 = vpack.c.b16 %v2156, %v2154
      %v2245 = vpack.c.b16 %v2157, %v2155
      %v2246 = vpack.c.b16 %v2160, %v2158
      %v2247 = vpack.c.b16 %v2161, %v2159
      %v2248 = vpack.c.b16 %v2164, %v2162
      %v2249 = vpack.c.b16 %v2165, %v2163
      %v2250 = vpack.c.b16 %v2168, %v2166
      %v2251 = vpack.c.b16 %v2169, %v2167
      %v2252 = vpack.c.b16 %v2172, %v2170
      %v2253 = vpack.c.b16 %v2173, %v2171
      %v2254 = vpack.c.b16 %v2176, %v2174
      %v2255 = vpack.c.b16 %v2177, %v2175
      %v2256 = vpack.c.b16 %v2180, %v2178
      %v2257 = vpack.c.b16 %v2181, %v2179
      %v2258 = vpack.c.b16 %v2184, %v2182
      %v2259 = vpack.c.b16 %v2185, %v2183
      %v2260 = vpack.c.b16 %v2188, %v2186
      %v2261 = vpack.c.b16 %v2189, %v2187
      %v2262 = vpack.c.b16 %v2192, %v2190
      %v2263 = vpack.c.b16 %v2193, %v2191
      %v2264 = vpack.c.b16 %v2196, %v2194
      %v2265 = vpack.c.b16 %v2197, %v2195
      %v2266 = vpack.c.b16 %v2200, %v2198
      %v2267 = vpack.c.b16 %v2201, %v2199
      %v2268 = vpack.c.b16 %v2204, %v2202
      %v2269 = vpack.c.b16 %v2205, %v2203
      %2334 = vmatprep.subr.bf16.mxu0 %v2221
      %2335 = vmatpush1.bf16.msra.mxu0 %v2220
      %2336 = vmatprep.subr.bf16.mxu0 %v2219
      %2337 = vmatpush1.bf16.msra.mxu0 %v2218
      %2338 = vmatprep.subr.bf16.mxu0 %v2217
      %2339 = vmatpush1.bf16.msra.mxu0 %v2216
      %2340 = vmatprep.subr.bf16.mxu0 %v2215
      %2341 = vmatpush1.bf16.msra.mxu0 %v2214
      %2342 = vmatprep.subr.bf16.mxu0 %v2213
      %2343 = vmatpush1.bf16.msra.mxu0 %v2212
      %2344 = vmatprep.subr.bf16.mxu0 %v2211
      %2345 = vmatpush1.bf16.msra.mxu0 %v2210
      %2346 = vmatprep.subr.bf16.mxu0 %v2209
      %2347 = vmatpush1.bf16.msra.mxu0 %v2208
      %2348 = vmatprep.subr.bf16.mxu0 %v2207
      %2349 = vmatpush1.bf16.msra.mxu0 %v2206
      %2350 = vmatprep.subr.bf16.mxu0 %v2237
      %2351 = vmatpush2.bf16.msra.mxu0 %v2236
      %2352 = vmatprep.subr.bf16.mxu0 %v2235
      %2353 = vmatpush2.bf16.msra.mxu0 %v2234
      %2354 = vmatprep.subr.bf16.mxu0 %v2233
      %2355 = vmatpush2.bf16.msra.mxu0 %v2232
      %2356 = vmatprep.subr.bf16.mxu0 %v2231
      %2357 = vmatpush2.bf16.msra.mxu0 %v2230
      %2358 = vmatprep.subr.bf16.mxu0 %v2229
      %2359 = vmatpush2.bf16.msra.mxu0 %v2228
      %2360 = vmatprep.subr.bf16.mxu0 %v2227
      %2361 = vmatpush2.bf16.msra.mxu0 %v2226
      %2362 = vmatprep.subr.bf16.mxu0 %v2225
      %2363 = vmatpush2.bf16.msra.mxu0 %v2224
      %2364 = vmatprep.subr.bf16.mxu0 %v2223
      %2365 = vmatpush2.bf16.msra.mxu0 %v2222
      %2366 = vmatprep.mubr.bf16.mxu0 %v1935
      %2367 = vmatmul.mubr.bf16.gmra.mxu0 %v1934
      %v2368 = vpop.f32.mrf.mxu0
      %v2369 = vadd.f32 %v2007, %v2368
      %v2370 = vpop.f32.mrf.mxu0
      %v2371 = vadd.f32 %v2011, %v2370
      %v2372 = vpop.f32.mrf.mxu0
      %v2373 = vpop.f32.mrf.mxu0
      %2374 = vdwg.mxu0
      %2375 = vmatprep.subr.bf16.mxu0 %v2253
      %2376 = vmatpush1.bf16.msra.mxu0 %v2252
      %2377 = vmatprep.subr.bf16.mxu0 %v2251
      %2378 = vmatpush1.bf16.msra.mxu0 %v2250
      %2379 = vmatprep.subr.bf16.mxu0 %v2249
      %2380 = vmatpush1.bf16.msra.mxu0 %v2248
      %2381 = vmatprep.subr.bf16.mxu0 %v2247
      %2382 = vmatpush1.bf16.msra.mxu0 %v2246
      %2383 = vmatprep.subr.bf16.mxu0 %v2245
      %2384 = vmatpush1.bf16.msra.mxu0 %v2244
      %2385 = vmatprep.subr.bf16.mxu0 %v2243
      %2386 = vmatpush1.bf16.msra.mxu0 %v2242
      %2387 = vmatprep.subr.bf16.mxu0 %v2241
      %2388 = vmatpush1.bf16.msra.mxu0 %v2240
      %2389 = vmatprep.subr.bf16.mxu0 %v2239
      %2390 = vmatpush1.bf16.msra.mxu0 %v2238
      %2391 = vmatprep.subr.bf16.mxu0 %v2269
      %2392 = vmatpush2.bf16.msra.mxu0 %v2268
      %2393 = vmatprep.subr.bf16.mxu0 %v2267
      %2394 = vmatpush2.bf16.msra.mxu0 %v2266
      %2395 = vmatprep.subr.bf16.mxu0 %v2265
      %2396 = vmatpush2.bf16.msra.mxu0 %v2264
      %2397 = vmatprep.subr.bf16.mxu0 %v2263
      %2398 = vmatpush2.bf16.msra.mxu0 %v2262
      %2399 = vmatprep.subr.bf16.mxu0 %v2261
      %2400 = vmatpush2.bf16.msra.mxu0 %v2260
      %2401 = vmatprep.subr.bf16.mxu0 %v2259
      %2402 = vmatpush2.bf16.msra.mxu0 %v2258
      %2403 = vmatprep.subr.bf16.mxu0 %v2257
      %2404 = vmatpush2.bf16.msra.mxu0 %v2256
      %2405 = vmatprep.subr.bf16.mxu0 %v2255
      %2406 = vmatpush2.bf16.msra.mxu0 %v2254
      %2407 = vmatprep.mubr.bf16.mxu0 %v1937
      %2408 = vmatmul.mubr.bf16.gmra.mxu0 %v1936
      %v2409 = vpop.f32.mrf.mxu0
      %v2410 = vadd.f32 %v2369, %v2409
      %v2411 = vpop.f32.mrf.mxu0
      %v2412 = vadd.f32 %v2371, %v2411
      %v2413 = vpop.f32.mrf.mxu0
      %v2414 = vpop.f32.mrf.mxu0
      %2415 = vdwg.mxu0
      %v2416 = vmax.f32 %v2410, 0.0
      %v2417 = vmax.f32 %v2412, 0.0
      %v2418 = vpack.c.bf16 %v2416, %v2416
      %v2419 = vpack.c.bf16 %v2417, %v2417
      %v2420 = vld [vmem:[%s5] sm:$0xf]
      %v2421 = vld [vmem:[%s5 + $0x4] sm:$0xf]
      %v2422 = vld [vmem:[%s5 + $0x8] sm:$0xf]
      %v2423 = vld [vmem:[%s5 + $0xc] sm:$0xf]
      %v2424 = vld [vmem:[%s5 + $0x10] sm:$0xf]
      %v2425 = vld [vmem:[%s5 + $0x14] sm:$0xf]
      %v2426 = vld [vmem:[%s5 + $0x18] sm:$0xf]
      %v2427 = vld [vmem:[%s5 + $0x1c] sm:$0xf]
      %v2428 = vld [vmem:[%s5 + $0x20] sm:$0xf]
      %v2429 = vld [vmem:[%s5 + $0x24] sm:$0xf]
      %v2430 = vld [vmem:[%s5 + $0x28] sm:$0xf]
      %v2431 = vld [vmem:[%s5 + $0x2c] sm:$0xf]
      %v2432 = vld [vmem:[%s5 + $0x30] sm:$0xf]
      %v2433 = vld [vmem:[%s5 + $0x34] sm:$0xf]
      %v2434 = vld [vmem:[%s5 + $0x38] sm:$0xf]
      %v2435 = vld [vmem:[%s5 + $0x3c] sm:$0xf]
      %v2436 = vld [vmem:[%s5 + $0x40] sm:$0xf]
      %v2437 = vld [vmem:[%s5 + $0x44] sm:$0xf]
      %v2438 = vld [vmem:[%s5 + $0x48] sm:$0xf]
      %v2439 = vld [vmem:[%s5 + $0x4c] sm:$0xf]
      %v2440 = vld [vmem:[%s5 + $0x50] sm:$0xf]
      %v2441 = vld [vmem:[%s5 + $0x54] sm:$0xf]
      %v2442 = vld [vmem:[%s5 + $0x58] sm:$0xf]
      %v2443 = vld [vmem:[%s5 + $0x5c] sm:$0xf]
      %v2444 = vld [vmem:[%s5 + $0x60] sm:$0xf]
      %v2445 = vld [vmem:[%s5 + $0x64] sm:$0xf]
      %v2446 = vld [vmem:[%s5 + $0x68] sm:$0xf]
      %v2447 = vld [vmem:[%s5 + $0x6c] sm:$0xf]
      %v2448 = vld [vmem:[%s5 + $0x70] sm:$0xf]
      %v2449 = vld [vmem:[%s5 + $0x74] sm:$0xf]
      %v2450 = vld [vmem:[%s5 + $0x78] sm:$0xf]
      %v2451 = vld [vmem:[%s5 + $0x7c] sm:$0xf]
      %v2452 = vld [vmem:[%s6] sm:$0x1]
      %v2454 = vlaneseq
      %v2455 = vshrl.u32 %v2454, 7
      %v2456 = vsub.s32 0, %v2455
      %v2457 = vrot.slane %v2452, %v2456
      %v2491 = vunpack.c.l.b16 %v2420
      %v2492 = vunpack.c.l.b16 %v2421
      %v2493 = vunpack.c.l.b16 %v2422
      %v2494 = vunpack.c.l.b16 %v2423
      %v2495 = vunpack.c.l.b16 %v2424
      %v2496 = vunpack.c.l.b16 %v2425
      %v2497 = vunpack.c.l.b16 %v2426
      %v2498 = vunpack.c.l.b16 %v2427
      %v2499 = vunpack.c.l.b16 %v2428
      %v2500 = vunpack.c.l.b16 %v2429
      %v2501 = vunpack.c.l.b16 %v2430
      %v2502 = vunpack.c.l.b16 %v2431
      %v2503 = vunpack.c.l.b16 %v2432
      %v2504 = vunpack.c.l.b16 %v2433
      %v2505 = vunpack.c.l.b16 %v2434
      %v2506 = vunpack.c.l.b16 %v2435
      %v2507 = vunpack.c.l.b16 %v2436
      %v2508 = vunpack.c.l.b16 %v2437
      %v2509 = vunpack.c.l.b16 %v2438
      %v2510 = vunpack.c.l.b16 %v2439
      %v2511 = vunpack.c.l.b16 %v2440
      %v2512 = vunpack.c.l.b16 %v2441
      %v2513 = vunpack.c.l.b16 %v2442
      %v2514 = vunpack.c.l.b16 %v2443
      %v2515 = vunpack.c.l.b16 %v2444
      %v2516 = vunpack.c.l.b16 %v2445
      %v2517 = vunpack.c.l.b16 %v2446
      %v2518 = vunpack.c.l.b16 %v2447
      %v2519 = vunpack.c.l.b16 %v2448
      %v2520 = vunpack.c.l.b16 %v2449
      %v2521 = vunpack.c.l.b16 %v2450
      %v2522 = vunpack.c.l.b16 %v2451
      %v2523 = vpack.c.b16 %v2492, %v2491
      %v2524 = vpack.c.b16 %v2494, %v2493
      %v2525 = vpack.c.b16 %v2496, %v2495
      %v2526 = vpack.c.b16 %v2498, %v2497
      %v2527 = vpack.c.b16 %v2500, %v2499
      %v2528 = vpack.c.b16 %v2502, %v2501
      %v2529 = vpack.c.b16 %v2504, %v2503
      %v2530 = vpack.c.b16 %v2506, %v2505
      %v2531 = vpack.c.b16 %v2508, %v2507
      %v2532 = vpack.c.b16 %v2510, %v2509
      %v2533 = vpack.c.b16 %v2512, %v2511
      %v2534 = vpack.c.b16 %v2514, %v2513
      %v2535 = vpack.c.b16 %v2516, %v2515
      %v2536 = vpack.c.b16 %v2518, %v2517
      %v2537 = vpack.c.b16 %v2520, %v2519
      %v2538 = vpack.c.b16 %v2522, %v2521
      %2555 = vmatprep.subr.bf16.mxu0 0
      %2556 = vmatpush1.bf16.msra.mxu0 %v2530
      %2557 = vmatprep.subr.bf16.mxu0 0
      %2558 = vmatpush1.bf16.msra.mxu0 %v2529
      %2559 = vmatprep.subr.bf16.mxu0 0
      %2560 = vmatpush1.bf16.msra.mxu0 %v2528
      %2561 = vmatprep.subr.bf16.mxu0 0
      %2562 = vmatpush1.bf16.msra.mxu0 %v2527
      %2563 = vmatprep.subr.bf16.mxu0 0
      %2564 = vmatpush1.bf16.msra.mxu0 %v2526
      %2565 = vmatprep.subr.bf16.mxu0 0
      %2566 = vmatpush1.bf16.msra.mxu0 %v2525
      %2567 = vmatprep.subr.bf16.mxu0 0
      %2568 = vmatpush1.bf16.msra.mxu0 %v2524
      %2569 = vmatprep.subr.bf16.mxu0 0
      %2570 = vmatpush1.bf16.msra.mxu0 %v2523
      %2571 = vmatprep.subr.bf16.mxu0 0
      %2572 = vmatpush2.bf16.msra.mxu0 %v2538
      %2573 = vmatprep.subr.bf16.mxu0 0
      %2574 = vmatpush2.bf16.msra.mxu0 %v2537
      %2575 = vmatprep.subr.bf16.mxu0 0
      %2576 = vmatpush2.bf16.msra.mxu0 %v2536
      %2577 = vmatprep.subr.bf16.mxu0 0
      %2578 = vmatpush2.bf16.msra.mxu0 %v2535
      %2579 = vmatprep.subr.bf16.mxu0 0
      %2580 = vmatpush2.bf16.msra.mxu0 %v2534
      %2581 = vmatprep.subr.bf16.mxu0 0
      %2582 = vmatpush2.bf16.msra.mxu0 %v2533
      %2583 = vmatprep.subr.bf16.mxu0 0
      %2584 = vmatpush2.bf16.msra.mxu0 %v2532
      %2585 = vmatprep.subr.bf16.mxu0 0
      %2586 = vmatpush2.bf16.msra.mxu0 %v2531
      %2587 = vmatprep.mubr.bf16.mxu0 %v2419
      %2588 = vmatmul.mubr.bf16.gmra.mxu0 %v2418
      %v2589 = vpop.f32.mrf.mxu0
      %v2590 = vadd.f32 %v2457, %v2589
      %v2591 = vpop.f32.mrf.mxu0
      %v2592 = vpop.f32.mrf.mxu0
      %v2593 = vpop.f32.mrf.mxu0
      %2594 = vdwg.mxu0
      %v2595 = vmax.f32 %v2590, 0.0
      %v2596 = vpack.c.bf16 %v2595, %v2595
      %v2597 = vld [vmem:[%s7] sm:$0xf]
      %v2598 = vld [vmem:[%s7 + $0x4] sm:$0xf]
      %v2599 = vld [vmem:[%s7 + $0x8] sm:$0xf]
      %v2600 = vld [vmem:[%s7 + $0xc] sm:$0xf]
      %v2601 = vld [vmem:[%s7 + $0x10] sm:$0xf]
      %v2602 = vld [vmem:[%s7 + $0x14] sm:$0xf]
      %v2603 = vld [vmem:[%s7 + $0x18] sm:$0xf]
      %v2604 = vld [vmem:[%s7 + $0x1c] sm:$0xf]
      %v2605 = vld [vmem:[%s7 + $0x20] sm:$0xf]
      %v2606 = vld [vmem:[%s7 + $0x24] sm:$0xf]
      %v2607 = vld [vmem:[%s7 + $0x28] sm:$0xf]
      %v2608 = vld [vmem:[%s7 + $0x2c] sm:$0xf]
      %v2609 = vld [vmem:[%s7 + $0x30] sm:$0xf]
      %v2610 = vld [vmem:[%s7 + $0x34] sm:$0xf]
      %v2611 = vld [vmem:[%s7 + $0x38] sm:$0xf]
      %v2612 = vld [vmem:[%s7 + $0x3c] sm:$0xf]
      %v2613 = vld [vmem:[%s8] sm:$0x1]
      %v2615 = vlaneseq
      %v2616 = vshrl.u32 %v2615, 7
      %v2617 = vsub.s32 0, %v2616
      %v2618 = vrot.slane %v2613, %v2617
      %v2636 = vunpack.c.l.b16 %v2597
      %v2637 = vunpack.c.l.b16 %v2598
      %v2638 = vunpack.c.l.b16 %v2599
      %v2639 = vunpack.c.l.b16 %v2600
      %v2640 = vunpack.c.l.b16 %v2601
      %v2641 = vunpack.c.l.b16 %v2602
      %v2642 = vunpack.c.l.b16 %v2603
      %v2643 = vunpack.c.l.b16 %v2604
      %v2644 = vunpack.c.l.b16 %v2605
      %v2645 = vunpack.c.l.b16 %v2606
      %v2646 = vunpack.c.l.b16 %v2607
      %v2647 = vunpack.c.l.b16 %v2608
      %v2648 = vunpack.c.l.b16 %v2609
      %v2649 = vunpack.c.l.b16 %v2610
      %v2650 = vunpack.c.l.b16 %v2611
      %v2651 = vunpack.c.l.b16 %v2612
      %v2652 = vpack.c.b16 %v2637, %v2636
      %v2653 = vpack.c.b16 %v2639, %v2638
      %v2654 = vpack.c.b16 %v2641, %v2640
      %v2655 = vpack.c.b16 %v2643, %v2642
      %v2656 = vpack.c.b16 %v2645, %v2644
      %v2657 = vpack.c.b16 %v2647, %v2646
      %v2658 = vpack.c.b16 %v2649, %v2648
      %v2659 = vpack.c.b16 %v2651, %v2650
      %2668 = vmatprep.subr.bf16.mxu0 0
      %2669 = vmatpush1.bf16.msra.mxu0 %v2659
      %2670 = vmatprep.subr.bf16.mxu0 0
      %2671 = vmatpush1.bf16.msra.mxu0 %v2658
      %2672 = vmatprep.subr.bf16.mxu0 0
      %2673 = vmatpush1.bf16.msra.mxu0 %v2657
      %2674 = vmatprep.subr.bf16.mxu0 0
      %2675 = vmatpush1.bf16.msra.mxu0 %v2656
      %2676 = vmatprep.subr.bf16.mxu0 0
      %2677 = vmatpush1.bf16.msra.mxu0 %v2655
      %2678 = vmatprep.subr.bf16.mxu0 0
      %2679 = vmatpush1.bf16.msra.mxu0 %v2654
      %2680 = vmatprep.subr.bf16.mxu0 0
      %2681 = vmatpush1.bf16.msra.mxu0 %v2653
      %2682 = vmatprep.subr.bf16.mxu0 0
      %2683 = vmatpush1.bf16.msra.mxu0 %v2652
      %2684 = vmatprep.subr.bf16.mxu0 0
      %2685 = vmatpush2.bf16.msra.mxu0 0
      %2686 = vmatprep.subr.bf16.mxu0 0
      %2687 = vmatpush2.bf16.msra.mxu0 0
      %2688 = vmatprep.subr.bf16.mxu0 0
      %2689 = vmatpush2.bf16.msra.mxu0 0
      %2690 = vmatprep.subr.bf16.mxu0 0
      %2691 = vmatpush2.bf16.msra.mxu0 0
      %2692 = vmatprep.subr.bf16.mxu0 0
      %2693 = vmatpush2.bf16.msra.mxu0 0
      %2694 = vmatprep.subr.bf16.mxu0 0
      %2695 = vmatpush2.bf16.msra.mxu0 0
      %2696 = vmatprep.subr.bf16.mxu0 0
      %2697 = vmatpush2.bf16.msra.mxu0 0
      %2698 = vmatprep.subr.bf16.mxu0 0
      %2699 = vmatpush2.bf16.msra.mxu0 0
      %2700 = vmatprep.mubr.bf16.mxu0 0
      %2701 = vmatmul.mubr.bf16.gmra.mxu0 %v2596
      %v2702 = vpop.f32.mrf.mxu0
      %v2703 = vadd.f32 %v2618, %v2702
      %v2704 = vpop.f32.mrf.mxu0
      %v2705 = vpop.f32.mrf.mxu0
      %v2706 = vpop.f32.mrf.mxu0
      %2707 = vdwg.mxu0
      %v2708 = vmax.f32 %v2703, 0.0
      %v2709 = vpack.c.bf16 %v2708, %v2708
      %v2710 = vld [vmem:[%s9] sm:$0xf]
      %v2711 = vld [vmem:[%s9 + $0x4] sm:$0xf]
      %v2712 = vld [vmem:[%s9 + $0x8] sm:$0xf]
      %v2713 = vld [vmem:[%s9 + $0xc] sm:$0xf]
      %v2714 = vld [vmem:[%s9 + $0x10] sm:$0xf]
      %v2715 = vld [vmem:[%s9 + $0x14] sm:$0xf]
      %v2716 = vld [vmem:[%s9 + $0x18] sm:$0xf]
      %v2717 = vld [vmem:[%s9 + $0x1c] sm:$0xf]
      %v2718 = vld [vmem:[%s10] sm:$0x1]
      %v2720 = vlaneseq
      %v2721 = vshrl.u32 %v2720, 7
      %v2722 = vsub.s32 0, %v2721
      %v2723 = vrot.slane %v2718, %v2722
      %v2733 = vunpack.c.l.b16 %v2710
      %v2734 = vunpack.c.l.b16 %v2711
      %v2735 = vunpack.c.l.b16 %v2712
      %v2736 = vunpack.c.l.b16 %v2713
      %v2737 = vunpack.c.l.b16 %v2714
      %v2738 = vunpack.c.l.b16 %v2715
      %v2739 = vunpack.c.l.b16 %v2716
      %v2740 = vunpack.c.l.b16 %v2717
      %v2741 = vpack.c.b16 %v2734, %v2733
      %v2742 = vpack.c.b16 %v2736, %v2735
      %v2743 = vpack.c.b16 %v2738, %v2737
      %v2744 = vpack.c.b16 %v2740, %v2739
      %vm2749 = vcmask 523264
      %v2751 = vsel %vm2749, %v2709, 0
      %2753 = vmatprep.subr.bf16.mxu0 0
      %2754 = vmatpush1.bf16.msra.mxu0 0
      %2755 = vmatprep.subr.bf16.mxu0 0
      %2756 = vmatpush1.bf16.msra.mxu0 0
      %2757 = vmatprep.subr.bf16.mxu0 0
      %2758 = vmatpush1.bf16.msra.mxu0 0
      %2759 = vmatprep.subr.bf16.mxu0 0
      %2760 = vmatpush1.bf16.msra.mxu0 0
      %2761 = vmatprep.subr.bf16.mxu0 0
      %2762 = vmatpush1.bf16.msra.mxu0 %v2744
      %2763 = vmatprep.subr.bf16.mxu0 0
      %2764 = vmatpush1.bf16.msra.mxu0 %v2743
      %2765 = vmatprep.subr.bf16.mxu0 0
      %2766 = vmatpush1.bf16.msra.mxu0 %v2742
      %2767 = vmatprep.subr.bf16.mxu0 0
      %2768 = vmatpush1.bf16.msra.mxu0 %v2741
      %2769 = vmatprep.subr.bf16.mxu0 0
      %2770 = vmatpush2.bf16.msra.mxu0 0
      %2771 = vmatprep.subr.bf16.mxu0 0
      %2772 = vmatpush2.bf16.msra.mxu0 0
      %2773 = vmatprep.subr.bf16.mxu0 0
      %2774 = vmatpush2.bf16.msra.mxu0 0
      %2775 = vmatprep.subr.bf16.mxu0 0
      %2776 = vmatpush2.bf16.msra.mxu0 0
      %2777 = vmatprep.subr.bf16.mxu0 0
      %2778 = vmatpush2.bf16.msra.mxu0 0
      %2779 = vmatprep.subr.bf16.mxu0 0
      %2780 = vmatpush2.bf16.msra.mxu0 0
      %2781 = vmatprep.subr.bf16.mxu0 0
      %2782 = vmatpush2.bf16.msra.mxu0 0
      %2783 = vmatprep.subr.bf16.mxu0 0
      %2784 = vmatpush2.bf16.msra.mxu0 0
      %2785 = vmatprep.mubr.bf16.mxu0 0
      %2786 = vmatmul.mubr.bf16.gmra.mxu0 %v2751
      %v2787 = vpop.f32.mrf.mxu0
      %v2788 = vadd.f32 %v2723, %v2787
      %v2789 = vpop.f32.mrf.mxu0
      %v2790 = vpop.f32.mrf.mxu0
      %v2791 = vpop.f32.mrf.mxu0
      %2792 = vdwg.mxu0
      %v2793 = vpack.c.bf16 %v2788, %v2788
      %2794 = vst [vmem:[%s384] sm:$0xf] %v2793
      %p2795 = scmp.lt.s32.totalorder %s22, 1
      %s2796 = scalar_select %p2795, %s22, 1
      %s2797 = smul.addr %s2796, 4
      %s2798 = scalar_lea.vmem %s11, %s2797
      // Predicated region
      $region65: #{mlp_forward.1} parent=63 // pred_check
        %p2799 = pneg %p276
      $region66: #{mlp_forward.1} parent=63 // pred_check_branch
        %2801 = sbr.rel (%p2799) target = $region68
      $region67: #{mlp_forward.1} parent=63 // pred_region
        _
      $region68: #{mlp_forward.1} parent=63 // pred_fallthru
        _
    $region64: #{mlp_forward.1} parent=5 // pred_fallthru
      _
    %p2802 = scmp.le.s32.totalorder 2, %s17
    // Predicated region
    $region69: #{mlp_forward.1} parent=5 // pred_check
      %p2803 = pneg %p2802
    $region70: #{mlp_forward.1} parent=5 // pred_check_branch
      %2805 = sbr.rel (%p2803) target = $region72
    $region71: #{mlp_forward.1} parent=5 // pred_region
      %s2806 = ssub.s32 %s17, 2
      // Predicated region
      $region73: #{mlp_forward.1} parent=71 // pred_check
        %p2807 = pneg %p282
      $region74: #{mlp_forward.1} parent=71 // pred_check_branch
        %2809 = sbr.rel (%p2807) target = $region76
      $region75: #{mlp_forward.1} parent=71 // pred_region
        %p2810 = scmp.lt.s32.totalorder %s23, 1
        %s2811 = scalar_select %p2810, %s23, 1
        %s2812 = smul.addr %s2811, 4
        %s2813 = scalar_lea.vmem %s11, %s2812
      $region76: #{mlp_forward.1} parent=71 // pred_fallthru
        _
    $region72: #{mlp_forward.1} parent=5 // pred_fallthru
      _
  $region6: #{mlp_forward.1} parent=0 // loop_footer
    %s21 = sadd.s32 1, %s17
  $region7: #{mlp_forward.1} parent=0 // loop_footer_branch
    %16 = sbr.rel target = $region3
  $region8: #{mlp_forward.1} parent=0 // loop_exit
    _

</llo_original>
